<compile_context>
chip_gen: v6e
topology: v6e:2x2x1
jax: 0.10.0
libtpu: 0.0.40
codegen_flags: <defaults>
</compile_context>

<pallas_src>
import numpy as np
import jax
import jax.numpy as jnp
from jax.experimental import pallas as pl
from jax.experimental.pallas import tpu as pltpu

# ---- small BERT config (consistent with the module's forward semantics) ----
SEQ = 8            # token ids per span (< clip_at=500, so single span)
HIDDEN = 32
NUM_HEADS = 4
HEAD_DIM = HIDDEN // NUM_HEADS
INTERMEDIATE = 64
NUM_LAYERS = 8     # -> 9 hidden states, so level index 7 and -1 are both valid
VOCAB = 64
MAX_POS = 16
TYPE_VOCAB = 2
LN_EPS = 1e-12


def _layernorm(x, g, b, eps=LN_EPS):
    mu = jnp.mean(x, axis=-1, keepdims=True)
    var = jnp.mean((x - mu) ** 2, axis=-1, keepdims=True)
    return (x - mu) * jax.lax.rsqrt(var + eps) * g + b


def _gelu(x):
    # TODO(synk): HF BERT uses exact erf-GELU; tanh approximation differs negligibly.
    c = np.float32(np.sqrt(2.0 / np.pi))
    return 0.5 * x * (1.0 + jnp.tanh(c * (x + 0.044715 * x * x * x)))


def bert_stack_kernel(x_ref,
                      wqkv_ref, bqkv_ref, wo_ref, bo_ref, ln1g_ref, ln1b_ref,
                      w1_ref, b1_ref, w2_ref, b2_ref, ln2g_ref, ln2b_ref,
                      out_ref, h_ref):
    """One grid step == one encoder layer; activation `h_ref` stays in VMEM."""
    layer = pl.program_id(0)

    # At layer 0, pull the embedding output into the resident activation buffer.
    @pl.when(layer == 0)
    def _():
        h_ref[...] = x_ref[...]

    x = h_ref[...]

    # Fused QKV projection: [S, H] @ [H, 3H] -> [S, 3H]  (one MXU sequence)
    qkv = jnp.dot(x, wqkv_ref[...], preferred_element_type=jnp.float32) + bqkv_ref[...]
    scale = np.float32(1.0 / np.sqrt(HEAD_DIM))
    q = qkv[:, :HIDDEN] * scale           # scale folded into q once
    k = qkv[:, HIDDEN:2 * HIDDEN]
    v = qkv[:, 2 * HIDDEN:]

    # Per-head scaled-dot-product attention. Head outputs are accumulated in
    # registers and concatenated lane-dense (no VMEM scratch, no masked stores).
    ctx_parts = []
    for h in range(NUM_HEADS):
        sl = slice(h * HEAD_DIM, (h + 1) * HEAD_DIM)
        qh = q[:, sl]
        kh = k[:, sl]
        vh = v[:, sl]
        # q @ k^T via dot_general dimension numbers (no explicit XLU transpose)
        s = jax.lax.dot_general(qh, kh, (((1,), (1,)), ((), ())),
                                preferred_element_type=jnp.float32)
        s = s - jnp.max(s, axis=-1, keepdims=True)
        p = jnp.exp(s)
        p = p * pl.reciprocal(jnp.sum(p, axis=-1, keepdims=True), approx=True)
        ctx_parts.append(jnp.dot(p, vh, preferred_element_type=jnp.float32))
    ctx = jnp.concatenate(ctx_parts, axis=-1)          # [S, H], lane-dense

    attn_out = jnp.dot(ctx, wo_ref[...], preferred_element_type=jnp.float32) + bo_ref[...]
    h1 = _layernorm(x + attn_out, ln1g_ref[...], ln1b_ref[...])

    ff = jnp.dot(h1, w1_ref[...], preferred_element_type=jnp.float32) + b1_ref[...]
    ff = _gelu(ff)
    ff = jnp.dot(ff, w2_ref[...], preferred_element_type=jnp.float32) + b2_ref[...]
    out = _layernorm(h1 + ff, ln2g_ref[...], ln2b_ref[...])

    h_ref[...] = out        # activation stays resident for the next layer
    out_ref[...] = out      # also emit this layer's hidden state


@jax.jit
def bert_layers(x, stacked):
    """All NUM_LAYERS encoder layers in a single Pallas kernel.

    Returns all per-layer hidden states, shape [NUM_LAYERS, SEQ, HIDDEN].
    """
    (wqkv, bqkv, wo, bo, ln1g, ln1b, w1, b1, w2, b2, ln2g, ln2b) = stacked

    def wspec(d1, d2):
        # stacked weight [L, d1, d2]; kernel sees the (d1, d2) slab of layer l
        return pl.BlockSpec((None, d1, d2), lambda l: (l, 0, 0))

    grid_spec = pltpu.PrefetchScalarGridSpec(
        num_scalar_prefetch=0,
        grid=(NUM_LAYERS,),
        in_specs=[
            pl.BlockSpec((SEQ, HIDDEN), lambda l: (0, 0)),   # x (same block every step)
            wspec(HIDDEN, 3 * HIDDEN),   # wqkv
            wspec(1, 3 * HIDDEN),        # bqkv
            wspec(HIDDEN, HIDDEN),       # wo
            wspec(1, HIDDEN),            # bo
            wspec(1, HIDDEN),            # ln1 gamma
            wspec(1, HIDDEN),            # ln1 beta
            wspec(HIDDEN, INTERMEDIATE),  # w1
            wspec(1, INTERMEDIATE),      # b1
            wspec(INTERMEDIATE, HIDDEN),  # w2
            wspec(1, HIDDEN),            # b2
            wspec(1, HIDDEN),            # ln2 gamma
            wspec(1, HIDDEN),            # ln2 beta
        ],
        out_specs=pl.BlockSpec((None, SEQ, HIDDEN), lambda l: (l, 0, 0)),
        scratch_shapes=[pltpu.VMEM((SEQ, HIDDEN), jnp.float32)],
    )
    return pl.pallas_call(
        bert_stack_kernel,
        out_shape=jax.ShapeDtypeStruct((NUM_LAYERS, SEQ, HIDDEN), jnp.float32),
        grid_spec=grid_spec,
        compiler_params=pltpu.CompilerParams(
            dimension_semantics=("arbitrary",)),   # layers are sequentially dependent
    )(x, wqkv, bqkv, wo, bo, ln1g, ln1b, w1, b1, w2, b2, ln2g, ln2b)


def init_params(key):
    """Deterministic weights, stacked with a leading layer axis for the fused kernel."""
    def dense(k, fan_in, fan_out):
        return 0.02 * jax.random.normal(k, (NUM_LAYERS, fan_in, fan_out), jnp.float32)

    keys = jax.random.split(key, 9)
    word_emb = 0.02 * jax.random.normal(keys[0], (VOCAB, HIDDEN), jnp.float32)
    pos_emb = 0.02 * jax.random.normal(keys[1], (MAX_POS, HIDDEN), jnp.float32)
    type_emb = 0.02 * jax.random.normal(keys[2], (TYPE_VOCAB, HIDDEN), jnp.float32)
    emb_ln_g = jnp.ones((1, HIDDEN), jnp.float32)
    emb_ln_b = jnp.zeros((1, HIDDEN), jnp.float32)

    L = NUM_LAYERS
    wq = dense(keys[3], HIDDEN, HIDDEN)
    wk = dense(keys[4], HIDDEN, HIDDEN)
    wv = dense(keys[5], HIDDEN, HIDDEN)
    wqkv = jnp.concatenate([wq, wk, wv], axis=-1)                 # [L, H, 3H]
    bqkv = jnp.zeros((L, 1, 3 * HIDDEN), jnp.float32)
    wo = dense(keys[6], HIDDEN, HIDDEN)
    bo = jnp.zeros((L, 1, HIDDEN), jnp.float32)
    ln1g = jnp.ones((L, 1, HIDDEN), jnp.float32)
    ln1b = jnp.zeros((L, 1, HIDDEN), jnp.float32)
    w1 = dense(keys[7], HIDDEN, INTERMEDIATE)
    b1 = jnp.zeros((L, 1, INTERMEDIATE), jnp.float32)
    w2 = dense(keys[8], INTERMEDIATE, HIDDEN)
    b2 = jnp.zeros((L, 1, HIDDEN), jnp.float32)
    ln2g = jnp.ones((L, 1, HIDDEN), jnp.float32)
    ln2b = jnp.zeros((L, 1, HIDDEN), jnp.float32)

    stacked = (wqkv, bqkv, wo, bo, ln1g, ln1b, w1, b1, w2, b2, ln2g, ln2b)
    return (word_emb, pos_emb, type_emb, emb_ln_g, emb_ln_b), stacked


def bert_forward(ids, emb_params, stacked, level=(7, -1)):
    """Equivalent of __BERT__.E_exp on a single span of token ids.

    Returns [S, len(level) * HIDDEN] (each token's selected-layer states concatenated).
    """
    word_emb, pos_emb, type_emb, ln_g, ln_b = emb_params
    # TODO(synk): tokenizer.encode / convert_ids_to_tokens have no Pallas equivalent;
    # we start from token ids directly. Embedding gather is plain-JAX glue.
    s = ids.shape[0]
    x = word_emb[ids] + pos_emb[:s] + type_emb[jnp.zeros((s,), jnp.int32)]
    x = _layernorm(x, ln_g, ln_b)

    layer_outs = bert_layers(x, stacked)                              # [L, S, H]
    hidden_states = jnp.concatenate([x[None], layer_outs], axis=0)    # [L+1, S, H]

    # torch.cat(hidden_states, dim=0)[level].transpose(0, 1).reshape(S, -1)
    n = hidden_states.shape[0]
    idx = jnp.array([l % n for l in level], jnp.int32)
    out = hidden_states[idx]                      # [L_sel, S, H]
    out = jnp.transpose(out, (1, 0, 2))           # [S, L_sel, H]
    out = out.reshape(s, -1)                      # [S, L_sel * H]
    return out


if __name__ == "__main__":
    key = jax.random.PRNGKey(0)
    k_ids, k_params = jax.random.split(key)
    ids = jax.random.randint(k_ids, (SEQ,), 0, VOCAB, dtype=jnp.int32)

    emb_params, stacked = init_params(k_params)
    out = bert_forward(ids, emb_params, stacked, level=(7, -1))
    out = jax.block_until_ready(out)

    assert out.shape == (SEQ, 2 * HIDDEN), out.shape
    assert jnp.all(jnp.isfinite(out))
    print("KERNEL_OK")
</pallas_src>

<mosaic_0001>
module attributes {stable_mosaic.version = 11 : i64} {
  func.func @bert_stack_kernel(%arg0: i32, %arg1: memref<8x32xf32, #tpu.memory_space<vmem>>, %arg2: memref<1x32x96xf32, #tpu.memory_space<vmem>>, %arg3: memref<1x1x96xf32, #tpu.memory_space<vmem>>, %arg4: memref<1x32x32xf32, #tpu.memory_space<vmem>>, %arg5: memref<1x1x32xf32, #tpu.memory_space<vmem>>, %arg6: memref<1x1x32xf32, #tpu.memory_space<vmem>>, %arg7: memref<1x1x32xf32, #tpu.memory_space<vmem>>, %arg8: memref<1x32x64xf32, #tpu.memory_space<vmem>>, %arg9: memref<1x1x64xf32, #tpu.memory_space<vmem>>, %arg10: memref<1x64x32xf32, #tpu.memory_space<vmem>>, %arg11: memref<1x1x32xf32, #tpu.memory_space<vmem>>, %arg12: memref<1x1x32xf32, #tpu.memory_space<vmem>>, %arg13: memref<1x1x32xf32, #tpu.memory_space<vmem>>, %arg14: memref<1x8x32xf32, #tpu.memory_space<vmem>>, %arg15: memref<8x32xf32, #tpu.memory_space<vmem>>) attributes {dimension_semantics = [#tpu.dimension_semantics<arbitrary>], iteration_bounds = array<i64: 8>, scalar_prefetch = 0 : i64, scratch_operands = 1 : i64, tpu.core_type = #tpu.core_type<tc>, window_params = [{pipeline_mode = #tpu.pipeline_mode<synchronous>, transform_indices = @transform_0, window_bounds = array<i64: 8, 32>}, {transform_indices = @transform_1, window_bounds = array<i64: 1, 32, 96>}, {transform_indices = @transform_2, window_bounds = array<i64: 1, 1, 96>}, {transform_indices = @transform_3, window_bounds = array<i64: 1, 32, 32>}, {transform_indices = @transform_4, window_bounds = array<i64: 1, 1, 32>}, {transform_indices = @transform_5, window_bounds = array<i64: 1, 1, 32>}, {transform_indices = @transform_6, window_bounds = array<i64: 1, 1, 32>}, {transform_indices = @transform_7, window_bounds = array<i64: 1, 32, 64>}, {transform_indices = @transform_8, window_bounds = array<i64: 1, 1, 64>}, {transform_indices = @transform_9, window_bounds = array<i64: 1, 64, 32>}, {transform_indices = @transform_10, window_bounds = array<i64: 1, 1, 32>}, {transform_indices = @transform_11, window_bounds = array<i64: 1, 1, 32>}, {transform_indices = @transform_12, window_bounds = array<i64: 1, 1, 32>}, {transform_indices = @transform_13, window_bounds = array<i64: 1, 8, 32>}]} {
    %c0_i32 = arith.constant 0 : i32
    %0 = arith.cmpi eq, %arg0, %c0_i32 : i32
    %1 = arith.extui %0 : i1 to i32
    %c0_i32_0 = arith.constant 0 : i32
    %2 = arith.cmpi ne, %1, %c0_i32_0 : i32
    scf.if %2 {
      %c0_77 = arith.constant 0 : index
      %c0_78 = arith.constant 0 : index
      %169 = vector.load %arg1[%c0_77, %c0_78] : memref<8x32xf32, #tpu.memory_space<vmem>>, vector<8x32xf32>
      %c0_79 = arith.constant 0 : index
      %c0_80 = arith.constant 0 : index
      %170 = vector.load %arg15[%c0_79, %c0_80] : memref<8x32xf32, #tpu.memory_space<vmem>>, vector<8x32xf32>
      tpu.vector_store %arg15[%c0_79, %c0_80], %169 {strides = array<i32>} : memref<8x32xf32, #tpu.memory_space<vmem>>, vector<8x32xf32>,
    } else {
    }
    %c0 = arith.constant 0 : index
    %c0_1 = arith.constant 0 : index
    %3 = vector.load %arg15[%c0, %c0_1] : memref<8x32xf32, #tpu.memory_space<vmem>>, vector<8x32xf32>
    %c0_2 = arith.constant 0 : index
    %c0_3 = arith.constant 0 : index
    %c0_4 = arith.constant 0 : index
    %4 = vector.load %arg2[%c0_2, %c0_3, %c0_4] : memref<1x32x96xf32, #tpu.memory_space<vmem>>, vector<1x32x96xf32>
    %5 = vector.shape_cast %4 : vector<1x32x96xf32> to vector<32x96xf32>
    %cst = arith.constant dense<0.000000e+00> : vector<8x96xf32>
    %6 = tpu.matmul %3, %5, %cst {dimension_numbers = #tpu.dot_dimension_numbers<[1], [0], [0], [1], [0, 0, 1, 1], [], []>} : vector<8x32xf32>, vector<32x96xf32>, vector<8x96xf32> -> vector<8x96xf32>
    %c0_5 = arith.constant 0 : index
    %c0_6 = arith.constant 0 : index
    %c0_7 = arith.constant 0 : index
    %7 = vector.load %arg3[%c0_5, %c0_6, %c0_7] : memref<1x1x96xf32, #tpu.memory_space<vmem>>, vector<1x1x96xf32>
    %8 = vector.shape_cast %7 : vector<1x1x96xf32> to vector<1x96xf32>
    %9 = vector.broadcast %8 : vector<1x96xf32> to vector<8x96xf32>
    %10 = arith.addf %6, %9 : vector<8x96xf32>
    %11 = vector.extract_strided_slice %10 {offsets = [0, 0], sizes = [8, 32], strides = [1, 1]} : vector<8x96xf32> to vector<8x32xf32>
    %cst_8 = arith.constant 0.353553385 : f32
    %12 = vector.broadcast %cst_8 : f32 to vector<8x32xf32>
    %13 = arith.mulf %11, %12 : vector<8x32xf32>
    %14 = vector.extract_strided_slice %10 {offsets = [0, 32], sizes = [8, 32], strides = [1, 1]} : vector<8x96xf32> to vector<8x32xf32>
    %15 = vector.extract_strided_slice %10 {offsets = [0, 64], sizes = [8, 32], strides = [1, 1]} : vector<8x96xf32> to vector<8x32xf32>
    %16 = vector.extract_strided_slice %13 {offsets = [0, 0], sizes = [8, 8], strides = [1, 1]} : vector<8x32xf32> to vector<8x8xf32>
    %17 = vector.extract_strided_slice %14 {offsets = [0, 0], sizes = [8, 8], strides = [1, 1]} : vector<8x32xf32> to vector<8x8xf32>
    %18 = vector.extract_strided_slice %15 {offsets = [0, 0], sizes = [8, 8], strides = [1, 1]} : vector<8x32xf32> to vector<8x8xf32>
    %cst_9 = arith.constant dense<0.000000e+00> : vector<8x8xf32>
    %19 = tpu.matmul %16, %17, %cst_9 {dimension_numbers = #tpu.dot_dimension_numbers<[1], [1], [0], [0], [0, 0, 1, 0], [], []>} : vector<8x8xf32>, vector<8x8xf32>, vector<8x8xf32> -> vector<8x8xf32>
    %cst_10 = arith.constant dense<0xFF800000> : vector<8xf32>
    %20 = vector.multi_reduction <maximumf>, %19, %cst_10 [1] : vector<8x8xf32> to vector<8xf32>
    %21 = vector.shape_cast %20 : vector<8xf32> to vector<8x1xf32>
    %22 = vector.broadcast %21 : vector<8x1xf32> to vector<8x8xf32>
    %23 = arith.subf %19, %22 : vector<8x8xf32>
    %24 = math.exp %23 : vector<8x8xf32>
    %cst_11 = arith.constant dense<0.000000e+00> : vector<8xf32>
    %25 = vector.multi_reduction <add>, %24, %cst_11 [1] : vector<8x8xf32> to vector<8xf32>
    %26 = vector.shape_cast %25 : vector<8xf32> to vector<8x1xf32>
    %27 = tpu.reciprocal %26 {approx = true} : vector<8x1xf32> -> vector<8x1xf32>
    %28 = vector.broadcast %27 : vector<8x1xf32> to vector<8x8xf32>
    %29 = arith.mulf %24, %28 : vector<8x8xf32>
    %cst_12 = arith.constant dense<0.000000e+00> : vector<8x8xf32>
    %30 = tpu.matmul %29, %18, %cst_12 {dimension_numbers = #tpu.dot_dimension_numbers<[1], [0], [0], [1], [0, 0, 1, 1], [], []>} : vector<8x8xf32>, vector<8x8xf32>, vector<8x8xf32> -> vector<8x8xf32>
    %31 = vector.extract_strided_slice %13 {offsets = [0, 8], sizes = [8, 8], strides = [1, 1]} : vector<8x32xf32> to vector<8x8xf32>
    %32 = vector.extract_strided_slice %14 {offsets = [0, 8], sizes = [8, 8], strides = [1, 1]} : vector<8x32xf32> to vector<8x8xf32>
    %33 = vector.extract_strided_slice %15 {offsets = [0, 8], sizes = [8, 8], strides = [1, 1]} : vector<8x32xf32> to vector<8x8xf32>
    %cst_13 = arith.constant dense<0.000000e+00> : vector<8x8xf32>
    %34 = tpu.matmul %31, %32, %cst_13 {dimension_numbers = #tpu.dot_dimension_numbers<[1], [1], [0], [0], [0, 0, 1, 0], [], []>} : vector<8x8xf32>, vector<8x8xf32>, vector<8x8xf32> -> vector<8x8xf32>
    %cst_14 = arith.constant dense<0xFF800000> : vector<8xf32>
    %35 = vector.multi_reduction <maximumf>, %34, %cst_14 [1] : vector<8x8xf32> to vector<8xf32>
    %36 = vector.shape_cast %35 : vector<8xf32> to vector<8x1xf32>
    %37 = vector.broadcast %36 : vector<8x1xf32> to vector<8x8xf32>
    %38 = arith.subf %34, %37 : vector<8x8xf32>
    %39 = math.exp %38 : vector<8x8xf32>
    %cst_15 = arith.constant dense<0.000000e+00> : vector<8xf32>
    %40 = vector.multi_reduction <add>, %39, %cst_15 [1] : vector<8x8xf32> to vector<8xf32>
    %41 = vector.shape_cast %40 : vector<8xf32> to vector<8x1xf32>
    %42 = tpu.reciprocal %41 {approx = true} : vector<8x1xf32> -> vector<8x1xf32>
    %43 = vector.broadcast %42 : vector<8x1xf32> to vector<8x8xf32>
    %44 = arith.mulf %39, %43 : vector<8x8xf32>
    %cst_16 = arith.constant dense<0.000000e+00> : vector<8x8xf32>
    %45 = tpu.matmul %44, %33, %cst_16 {dimension_numbers = #tpu.dot_dimension_numbers<[1], [0], [0], [1], [0, 0, 1, 1], [], []>} : vector<8x8xf32>, vector<8x8xf32>, vector<8x8xf32> -> vector<8x8xf32>
    %46 = vector.extract_strided_slice %13 {offsets = [0, 16], sizes = [8, 8], strides = [1, 1]} : vector<8x32xf32> to vector<8x8xf32>
    %47 = vector.extract_strided_slice %14 {offsets = [0, 16], sizes = [8, 8], strides = [1, 1]} : vector<8x32xf32> to vector<8x8xf32>
    %48 = vector.extract_strided_slice %15 {offsets = [0, 16], sizes = [8, 8], strides = [1, 1]} : vector<8x32xf32> to vector<8x8xf32>
    %cst_17 = arith.constant dense<0.000000e+00> : vector<8x8xf32>
    %49 = tpu.matmul %46, %47, %cst_17 {dimension_numbers = #tpu.dot_dimension_numbers<[1], [1], [0], [0], [0, 0, 1, 0], [], []>} : vector<8x8xf32>, vector<8x8xf32>, vector<8x8xf32> -> vector<8x8xf32>
    %cst_18 = arith.constant dense<0xFF800000> : vector<8xf32>
    %50 = vector.multi_reduction <maximumf>, %49, %cst_18 [1] : vector<8x8xf32> to vector<8xf32>
    %51 = vector.shape_cast %50 : vector<8xf32> to vector<8x1xf32>
    %52 = vector.broadcast %51 : vector<8x1xf32> to vector<8x8xf32>
    %53 = arith.subf %49, %52 : vector<8x8xf32>
    %54 = math.exp %53 : vector<8x8xf32>
    %cst_19 = arith.constant dense<0.000000e+00> : vector<8xf32>
    %55 = vector.multi_reduction <add>, %54, %cst_19 [1] : vector<8x8xf32> to vector<8xf32>
    %56 = vector.shape_cast %55 : vector<8xf32> to vector<8x1xf32>
    %57 = tpu.reciprocal %56 {approx = true} : vector<8x1xf32> -> vector<8x1xf32>
    %58 = vector.broadcast %57 : vector<8x1xf32> to vector<8x8xf32>
    %59 = arith.mulf %54, %58 : vector<8x8xf32>
    %cst_20 = arith.constant dense<0.000000e+00> : vector<8x8xf32>
    %60 = tpu.matmul %59, %48, %cst_20 {dimension_numbers = #tpu.dot_dimension_numbers<[1], [0], [0], [1], [0, 0, 1, 1], [], []>} : vector<8x8xf32>, vector<8x8xf32>, vector<8x8xf32> -> vector<8x8xf32>
    %61 = vector.extract_strided_slice %13 {offsets = [0, 24], sizes = [8, 8], strides = [1, 1]} : vector<8x32xf32> to vector<8x8xf32>
    %62 = vector.extract_strided_slice %14 {offsets = [0, 24], sizes = [8, 8], strides = [1, 1]} : vector<8x32xf32> to vector<8x8xf32>
    %63 = vector.extract_strided_slice %15 {offsets = [0, 24], sizes = [8, 8], strides = [1, 1]} : vector<8x32xf32> to vector<8x8xf32>
    %cst_21 = arith.constant dense<0.000000e+00> : vector<8x8xf32>
    %64 = tpu.matmul %61, %62, %cst_21 {dimension_numbers = #tpu.dot_dimension_numbers<[1], [1], [0], [0], [0, 0, 1, 0], [], []>} : vector<8x8xf32>, vector<8x8xf32>, vector<8x8xf32> -> vector<8x8xf32>
    %cst_22 = arith.constant dense<0xFF800000> : vector<8xf32>
    %65 = vector.multi_reduction <maximumf>, %64, %cst_22 [1] : vector<8x8xf32> to vector<8xf32>
    %66 = vector.shape_cast %65 : vector<8xf32> to vector<8x1xf32>
    %67 = vector.broadcast %66 : vector<8x1xf32> to vector<8x8xf32>
    %68 = arith.subf %64, %67 : vector<8x8xf32>
    %69 = math.exp %68 : vector<8x8xf32>
    %cst_23 = arith.constant dense<0.000000e+00> : vector<8xf32>
    %70 = vector.multi_reduction <add>, %69, %cst_23 [1] : vector<8x8xf32> to vector<8xf32>
    %71 = vector.shape_cast %70 : vector<8xf32> to vector<8x1xf32>
    %72 = tpu.reciprocal %71 {approx = true} : vector<8x1xf32> -> vector<8x1xf32>
    %73 = vector.broadcast %72 : vector<8x1xf32> to vector<8x8xf32>
    %74 = arith.mulf %69, %73 : vector<8x8xf32>
    %cst_24 = arith.constant dense<0.000000e+00> : vector<8x8xf32>
    %75 = tpu.matmul %74, %63, %cst_24 {dimension_numbers = #tpu.dot_dimension_numbers<[1], [0], [0], [1], [0, 0, 1, 1], [], []>} : vector<8x8xf32>, vector<8x8xf32>, vector<8x8xf32> -> vector<8x8xf32>
    %76 = tpu.concatenate %30, %45, %60, %75 in 1 : vector<8x8xf32>, vector<8x8xf32>, vector<8x8xf32>, vector<8x8xf32> -> vector<8x32xf32>
    %c0_25 = arith.constant 0 : index
    %c0_26 = arith.constant 0 : index
    %c0_27 = arith.constant 0 : index
    %77 = vector.load %arg4[%c0_25, %c0_26, %c0_27] : memref<1x32x32xf32, #tpu.memory_space<vmem>>, vector<1x32x32xf32>
    %78 = vector.shape_cast %77 : vector<1x32x32xf32> to vector<32x32xf32>
    %cst_28 = arith.constant dense<0.000000e+00> : vector<8x32xf32>
    %79 = tpu.matmul %76, %78, %cst_28 {dimension_numbers = #tpu.dot_dimension_numbers<[1], [0], [0], [1], [0, 0, 1, 1], [], []>} : vector<8x32xf32>, vector<32x32xf32>, vector<8x32xf32> -> vector<8x32xf32>
    %c0_29 = arith.constant 0 : index
    %c0_30 = arith.constant 0 : index
    %c0_31 = arith.constant 0 : index
    %80 = vector.load %arg5[%c0_29, %c0_30, %c0_31] : memref<1x1x32xf32, #tpu.memory_space<vmem>>, vector<1x1x32xf32>
    %81 = vector.shape_cast %80 : vector<1x1x32xf32> to vector<1x32xf32>
    %82 = vector.broadcast %81 : vector<1x32xf32> to vector<8x32xf32>
    %83 = arith.addf %79, %82 : vector<8x32xf32>
    %84 = arith.addf %3, %83 : vector<8x32xf32>
    %c0_32 = arith.constant 0 : index
    %c0_33 = arith.constant 0 : index
    %c0_34 = arith.constant 0 : index
    %85 = vector.load %arg6[%c0_32, %c0_33, %c0_34] : memref<1x1x32xf32, #tpu.memory_space<vmem>>, vector<1x1x32xf32>
    %86 = vector.shape_cast %85 : vector<1x1x32xf32> to vector<1x32xf32>
    %c0_35 = arith.constant 0 : index
    %c0_36 = arith.constant 0 : index
    %c0_37 = arith.constant 0 : index
    %87 = vector.load %arg7[%c0_35, %c0_36, %c0_37] : memref<1x1x32xf32, #tpu.memory_space<vmem>>, vector<1x1x32xf32>
    %88 = vector.shape_cast %87 : vector<1x1x32xf32> to vector<1x32xf32>
    %cst_38 = arith.constant dense<0.000000e+00> : vector<8xf32>
    %89 = vector.multi_reduction <add>, %84, %cst_38 [1] : vector<8x32xf32> to vector<8xf32>
    %90 = vector.shape_cast %89 : vector<8xf32> to vector<8x1xf32>
    %cst_39 = arith.constant 3.200000e+01 : f32
    %91 = vector.broadcast %cst_39 : f32 to vector<8x1xf32>
    %92 = arith.divf %90, %91 : vector<8x1xf32>
    %93 = vector.broadcast %92 : vector<8x1xf32> to vector<8x32xf32>
    %94 = arith.subf %84, %93 : vector<8x32xf32>
    %95 = arith.mulf %94, %94 : vector<8x32xf32>
    %cst_40 = arith.constant dense<0.000000e+00> : vector<8xf32>
    %96 = vector.multi_reduction <add>, %95, %cst_40 [1] : vector<8x32xf32> to vector<8xf32>
    %97 = vector.shape_cast %96 : vector<8xf32> to vector<8x1xf32>
    %cst_41 = arith.constant 3.200000e+01 : f32
    %98 = vector.broadcast %cst_41 : f32 to vector<8x1xf32>
    %99 = arith.divf %97, %98 : vector<8x1xf32>
    %100 = vector.broadcast %92 : vector<8x1xf32> to vector<8x32xf32>
    %101 = arith.subf %84, %100 : vector<8x32xf32>
    %cst_42 = arith.constant 9.99999996E-13 : f32
    %102 = vector.broadcast %cst_42 : f32 to vector<8x1xf32>
    %103 = arith.addf %99, %102 : vector<8x1xf32>
    %104 = math.rsqrt %103 : vector<8x1xf32>
    %105 = vector.broadcast %104 : vector<8x1xf32> to vector<8x32xf32>
    %106 = arith.mulf %101, %105 : vector<8x32xf32>
    %107 = vector.broadcast %86 : vector<1x32xf32> to vector<8x32xf32>
    %108 = arith.mulf %106, %107 : vector<8x32xf32>
    %109 = vector.broadcast %88 : vector<1x32xf32> to vector<8x32xf32>
    %110 = arith.addf %108, %109 : vector<8x32xf32>
    %c0_43 = arith.constant 0 : index
    %c0_44 = arith.constant 0 : index
    %c0_45 = arith.constant 0 : index
    %111 = vector.load %arg8[%c0_43, %c0_44, %c0_45] : memref<1x32x64xf32, #tpu.memory_space<vmem>>, vector<1x32x64xf32>
    %112 = vector.shape_cast %111 : vector<1x32x64xf32> to vector<32x64xf32>
    %cst_46 = arith.constant dense<0.000000e+00> : vector<8x64xf32>
    %113 = tpu.matmul %110, %112, %cst_46 {dimension_numbers = #tpu.dot_dimension_numbers<[1], [0], [0], [1], [0, 0, 1, 1], [], []>} : vector<8x32xf32>, vector<32x64xf32>, vector<8x64xf32> -> vector<8x64xf32>
    %c0_47 = arith.constant 0 : index
    %c0_48 = arith.constant 0 : index
    %c0_49 = arith.constant 0 : index
    %114 = vector.load %arg9[%c0_47, %c0_48, %c0_49] : memref<1x1x64xf32, #tpu.memory_space<vmem>>, vector<1x1x64xf32>
    %115 = vector.shape_cast %114 : vector<1x1x64xf32> to vector<1x64xf32>
    %116 = vector.broadcast %115 : vector<1x64xf32> to vector<8x64xf32>
    %117 = arith.addf %113, %116 : vector<8x64xf32>
    %cst_50 = arith.constant 5.000000e-01 : f32
    %118 = vector.broadcast %cst_50 : f32 to vector<8x64xf32>
    %119 = arith.mulf %118, %117 : vector<8x64xf32>
    %cst_51 = arith.constant 4.471500e-02 : f32
    %120 = vector.broadcast %cst_51 : f32 to vector<8x64xf32>
    %121 = arith.mulf %120, %117 : vector<8x64xf32>
    %122 = arith.mulf %121, %117 : vector<8x64xf32>
    %123 = arith.mulf %122, %117 : vector<8x64xf32>
    %124 = arith.addf %117, %123 : vector<8x64xf32>
    %cst_52 = arith.constant 0.797884583 : f32
    %125 = vector.broadcast %cst_52 : f32 to vector<8x64xf32>
    %126 = arith.mulf %125, %124 : vector<8x64xf32>
    %127 = math.tanh %126 : vector<8x64xf32>
    %cst_53 = arith.constant 1.000000e+00 : f32
    %128 = vector.broadcast %cst_53 : f32 to vector<8x64xf32>
    %129 = arith.addf %128, %127 : vector<8x64xf32>
    %130 = arith.mulf %119, %129 : vector<8x64xf32>
    %c0_54 = arith.constant 0 : index
    %c0_55 = arith.constant 0 : index
    %c0_56 = arith.constant 0 : index
    %131 = vector.load %arg10[%c0_54, %c0_55, %c0_56] : memref<1x64x32xf32, #tpu.memory_space<vmem>>, vector<1x64x32xf32>
    %132 = vector.shape_cast %131 : vector<1x64x32xf32> to vector<64x32xf32>
    %cst_57 = arith.constant dense<0.000000e+00> : vector<8x32xf32>
    %133 = tpu.matmul %130, %132, %cst_57 {dimension_numbers = #tpu.dot_dimension_numbers<[1], [0], [0], [1], [0, 0, 1, 1], [], []>} : vector<8x64xf32>, vector<64x32xf32>, vector<8x32xf32> -> vector<8x32xf32>
    %c0_58 = arith.constant 0 : index
    %c0_59 = arith.constant 0 : index
    %c0_60 = arith.constant 0 : index
    %134 = vector.load %arg11[%c0_58, %c0_59, %c0_60] : memref<1x1x32xf32, #tpu.memory_space<vmem>>, vector<1x1x32xf32>
    %135 = vector.shape_cast %134 : vector<1x1x32xf32> to vector<1x32xf32>
    %136 = vector.broadcast %135 : vector<1x32xf32> to vector<8x32xf32>
    %137 = arith.addf %133, %136 : vector<8x32xf32>
    %138 = arith.addf %110, %137 : vector<8x32xf32>
    %c0_61 = arith.constant 0 : index
    %c0_62 = arith.constant 0 : index
    %c0_63 = arith.constant 0 : index
    %139 = vector.load %arg12[%c0_61, %c0_62, %c0_63] : memref<1x1x32xf32, #tpu.memory_space<vmem>>, vector<1x1x32xf32>
    %140 = vector.shape_cast %139 : vector<1x1x32xf32> to vector<1x32xf32>
    %c0_64 = arith.constant 0 : index
    %c0_65 = arith.constant 0 : index
    %c0_66 = arith.constant 0 : index
    %141 = vector.load %arg13[%c0_64, %c0_65, %c0_66] : memref<1x1x32xf32, #tpu.memory_space<vmem>>, vector<1x1x32xf32>
    %142 = vector.shape_cast %141 : vector<1x1x32xf32> to vector<1x32xf32>
    %cst_67 = arith.constant dense<0.000000e+00> : vector<8xf32>
    %143 = vector.multi_reduction <add>, %138, %cst_67 [1] : vector<8x32xf32> to vector<8xf32>
    %144 = vector.shape_cast %143 : vector<8xf32> to vector<8x1xf32>
    %cst_68 = arith.constant 3.200000e+01 : f32
    %145 = vector.broadcast %cst_68 : f32 to vector<8x1xf32>
    %146 = arith.divf %144, %145 : vector<8x1xf32>
    %147 = vector.broadcast %146 : vector<8x1xf32> to vector<8x32xf32>
    %148 = arith.subf %138, %147 : vector<8x32xf32>
    %149 = arith.mulf %148, %148 : vector<8x32xf32>
    %cst_69 = arith.constant dense<0.000000e+00> : vector<8xf32>
    %150 = vector.multi_reduction <add>, %149, %cst_69 [1] : vector<8x32xf32> to vector<8xf32>
    %151 = vector.shape_cast %150 : vector<8xf32> to vector<8x1xf32>
    %cst_70 = arith.constant 3.200000e+01 : f32
    %152 = vector.broadcast %cst_70 : f32 to vector<8x1xf32>
    %153 = arith.divf %151, %152 : vector<8x1xf32>
    %154 = vector.broadcast %146 : vector<8x1xf32> to vector<8x32xf32>
    %155 = arith.subf %138, %154 : vector<8x32xf32>
    %cst_71 = arith.constant 9.99999996E-13 : f32
    %156 = vector.broadcast %cst_71 : f32 to vector<8x1xf32>
    %157 = arith.addf %153, %156 : vector<8x1xf32>
    %158 = math.rsqrt %157 : vector<8x1xf32>
    %159 = vector.broadcast %158 : vector<8x1xf32> to vector<8x32xf32>
    %160 = arith.mulf %155, %159 : vector<8x32xf32>
    %161 = vector.broadcast %140 : vector<1x32xf32> to vector<8x32xf32>
    %162 = arith.mulf %160, %161 : vector<8x32xf32>
    %163 = vector.broadcast %142 : vector<1x32xf32> to vector<8x32xf32>
    %164 = arith.addf %162, %163 : vector<8x32xf32>
    %c0_72 = arith.constant 0 : index
    %c0_73 = arith.constant 0 : index
    %165 = vector.load %arg15[%c0_72, %c0_73] : memref<8x32xf32, #tpu.memory_space<vmem>>, vector<8x32xf32>
    tpu.vector_store %arg15[%c0_72, %c0_73], %164 {strides = array<i32>} : memref<8x32xf32, #tpu.memory_space<vmem>>, vector<8x32xf32>,
    %c0_74 = arith.constant 0 : index
    %c0_75 = arith.constant 0 : index
    %c0_76 = arith.constant 0 : index
    %166 = vector.load %arg14[%c0_74, %c0_75, %c0_76] : memref<1x8x32xf32, #tpu.memory_space<vmem>>, vector<1x8x32xf32>
    %167 = vector.shape_cast %166 : vector<1x8x32xf32> to vector<8x32xf32>
    %168 = vector.shape_cast %164 : vector<8x32xf32> to vector<1x8x32xf32>
    tpu.vector_store %arg14[%c0_74, %c0_75, %c0_76], %168 {strides = array<i32>} : memref<1x8x32xf32, #tpu.memory_space<vmem>>, vector<1x8x32xf32>,
    return
  }
  func.func @transform_0(%arg0: i32) -> (i32, i32) {
    %c0_i32 = arith.constant 0 : i32
    %c0_i32_0 = arith.constant 0 : i32
    %c0_i32_1 = arith.constant 0 : i32
    return %c0_i32, %c0_i32_0 : i32, i32
  }
  func.func @transform_1(%arg0: i32) -> (i32, i32, i32) {
    %c0_i32 = arith.constant 0 : i32
    %c0_i32_0 = arith.constant 0 : i32
    %c0_i32_1 = arith.constant 0 : i32
    return %arg0, %c0_i32, %c0_i32_0 : i32, i32, i32
  }
  func.func @transform_2(%arg0: i32) -> (i32, i32, i32) {
    %c0_i32 = arith.constant 0 : i32
    %c0_i32_0 = arith.constant 0 : i32
    %c0_i32_1 = arith.constant 0 : i32
    return %arg0, %c0_i32, %c0_i32_0 : i32, i32, i32
  }
  func.func @transform_3(%arg0: i32) -> (i32, i32, i32) {
    %c0_i32 = arith.constant 0 : i32
    %c0_i32_0 = arith.constant 0 : i32
    %c0_i32_1 = arith.constant 0 : i32
    return %arg0, %c0_i32, %c0_i32_0 : i32, i32, i32
  }
  func.func @transform_4(%arg0: i32) -> (i32, i32, i32) {
    %c0_i32 = arith.constant 0 : i32
    %c0_i32_0 = arith.constant 0 : i32
    %c0_i32_1 = arith.constant 0 : i32
    return %arg0, %c0_i32, %c0_i32_0 : i32, i32, i32
  }
  func.func @transform_5(%arg0: i32) -> (i32, i32, i32) {
    %c0_i32 = arith.constant 0 : i32
    %c0_i32_0 = arith.constant 0 : i32
    %c0_i32_1 = arith.constant 0 : i32
    return %arg0, %c0_i32, %c0_i32_0 : i32, i32, i32
  }
  func.func @transform_6(%arg0: i32) -> (i32, i32, i32) {
    %c0_i32 = arith.constant 0 : i32
    %c0_i32_0 = arith.constant 0 : i32
    %c0_i32_1 = arith.constant 0 : i32
    return %arg0, %c0_i32, %c0_i32_0 : i32, i32, i32
  }
  func.func @transform_7(%arg0: i32) -> (i32, i32, i32) {
    %c0_i32 = arith.constant 0 : i32
    %c0_i32_0 = arith.constant 0 : i32
    %c0_i32_1 = arith.constant 0 : i32
    return %arg0, %c0_i32, %c0_i32_0 : i32, i32, i32
  }
  func.func @transform_8(%arg0: i32) -> (i32, i32, i32) {
    %c0_i32 = arith.constant 0 : i32
    %c0_i32_0 = arith.constant 0 : i32
    %c0_i32_1 = arith.constant 0 : i32
    return %arg0, %c0_i32, %c0_i32_0 : i32, i32, i32
  }
  func.func @transform_9(%arg0: i32) -> (i32, i32, i32) {
    %c0_i32 = arith.constant 0 : i32
    %c0_i32_0 = arith.constant 0 : i32
    %c0_i32_1 = arith.constant 0 : i32
    return %arg0, %c0_i32, %c0_i32_0 : i32, i32, i32
  }
  func.func @transform_10(%arg0: i32) -> (i32, i32, i32) {
    %c0_i32 = arith.constant 0 : i32
    %c0_i32_0 = arith.constant 0 : i32
    %c0_i32_1 = arith.constant 0 : i32
    return %arg0, %c0_i32, %c0_i32_0 : i32, i32, i32
  }
  func.func @transform_11(%arg0: i32) -> (i32, i32, i32) {
    %c0_i32 = arith.constant 0 : i32
    %c0_i32_0 = arith.constant 0 : i32
    %c0_i32_1 = arith.constant 0 : i32
    return %arg0, %c0_i32, %c0_i32_0 : i32, i32, i32
  }
  func.func @transform_12(%arg0: i32) -> (i32, i32, i32) {
    %c0_i32 = arith.constant 0 : i32
    %c0_i32_0 = arith.constant 0 : i32
    %c0_i32_1 = arith.constant 0 : i32
    return %arg0, %c0_i32, %c0_i32_0 : i32, i32, i32
  }
  func.func @transform_13(%arg0: i32) -> (i32, i32, i32) {
    %c0_i32 = arith.constant 0 : i32
    %c0_i32_0 = arith.constant 0 : i32
    %c0_i32_1 = arith.constant 0 : i32
    return %arg0, %c0_i32, %c0_i32_0 : i32, i32, i32
  }
}

</mosaic_0001>

<llo_original>
// kernel: bert_layers.1
$region0: #{bert_layers.1}
  #allocation0 [shape = 'u32[]', space=smem, size = 0x4, offset = 0x4, fixed_abs, tag = 'smem constant byte address 0x4 - core index']
  #allocation1 [shape = 'u32[144,128]{1,0:T(1,128)}', space=vmem, size = 0x12000, scoped, tag = 'internal scratch']
  #allocation2 [shape = 'f32[8,32]{1,0:T(8,128)}', space=vmem, size = 0x1000, scoped, tag = 'scratch operand']
  %s0 = inlined_call_operand.hbm [shape: f32[8,32], index: 0, kind: input, shape index: {}]
  %s1 = inlined_call_operand.vmem [shape: f32[8,32,96], index: 1, kind: input, shape index: {}]
  %s2 = inlined_call_operand.hbm [shape: f32[8,1,96], index: 2, kind: input, shape index: {}]
  %s3 = inlined_call_operand.vmem [shape: f32[8,32,32], index: 3, kind: input, shape index: {}]
  %s4 = inlined_call_operand.hbm [shape: f32[8,1,32], index: 4, kind: input, shape index: {}]
  %s5 = inlined_call_operand.vmem [shape: f32[8,1,32], index: 5, kind: input, shape index: {}]
  %s6 = inlined_call_operand.hbm [shape: f32[8,1,32], index: 6, kind: input, shape index: {}]
  %s7 = inlined_call_operand.vmem [shape: f32[8,32,64], index: 7, kind: input, shape index: {}]
  %s8 = inlined_call_operand.hbm [shape: f32[8,1,64], index: 8, kind: input, shape index: {}]
  %s9 = inlined_call_operand.vmem [shape: f32[8,64,32], index: 9, kind: input, shape index: {}]
  %s10 = inlined_call_operand.vmem [shape: f32[8,1,32], index: 10, kind: input, shape index: {}]
  %s11 = inlined_call_operand.hbm [shape: f32[8,1,32], index: 11, kind: input, shape index: {}]
  %s12 = inlined_call_operand.hbm [shape: f32[8,1,32], index: 12, kind: input, shape index: {}]
  %s13 = inlined_call_operand.hbm [shape: f32[8,8,32], index: 13, kind: output, shape index: {}]
  %s14 = sld [smem:[#allocation0]]
  $region117: #{bert_layers.1} parent=0
    _
  %s16 = ssub.s32 1, %s14
  %s17 = scalar_select 0, %s16, %s14
  $region1: #{bert_layers.1} parent=0
    #allocation3 [shape = 'u8[4096]{0}', space=vmem, size = 0x1000, scoped, tag = 'input window, operand 0, single buffered']
    #allocation4 [shape = 's32[2]{0}', space=sflag, size = 0x8, scoped, tag = 'scoped memory for bert_layers.1']
    #allocation5 [shape = 's32[2]{0}', space=sflag, size = 0x8, scoped, tag = 'scoped memory for bert_layers.1']
    #allocation6 [shape = 'u8[1024]{0}', space=vmem, size = 0x400, scoped, tag = 'input window, operand 2']
    #allocation7 [shape = 's32[2]{0}', space=sflag, size = 0x8, scoped, tag = 'scoped memory for bert_layers.1']
    #allocation8 [shape = 'u8[1024]{0}', space=vmem, size = 0x400, scoped, tag = 'input window, operand 4']
    #allocation9 [shape = 'u8[1024]{0}', space=vmem, size = 0x400, scoped, tag = 'input window, operand 6']
    #allocation10 [shape = 's32[2]{0}', space=sflag, size = 0x8, scoped, tag = 'scoped memory for bert_layers.1']
    #allocation11 [shape = 'u8[1024]{0}', space=vmem, size = 0x400, scoped, tag = 'input window, operand 8']
    #allocation12 [shape = 'u8[1024]{0}', space=vmem, size = 0x400, scoped, tag = 'input window, operand 11']
    #allocation13 [shape = 's32[2]{0}', space=sflag, size = 0x8, scoped, tag = 'scoped memory for bert_layers.1']
    #allocation14 [shape = 'u8[1024]{0}', space=vmem, size = 0x400, scoped, tag = 'input window, operand 12']
    #allocation15 [shape = 'u8[8192]{0}', space=vmem, size = 0x2000, scoped, tag = 'output window, operand 0']
    %18 = vsyncpa [#allocation4], 0
    %19 = vsyncpa [#allocation7], 0
    %s20 = scalar_lea.sflag [#allocation7], 1
    %21 = vsyncpa %s20, 0
    %22 = vsyncpa [#allocation10], 0
    %s23 = scalar_lea.sflag [#allocation10], 1
    %24 = vsyncpa %s23, 0
    %25 = vsyncpa [#allocation13], 0
    %s26 = scalar_lea.sflag [#allocation13], 1
    %27 = vsyncpa %s26, 0
    %28 = vsyncpa [#allocation5], 0
    %s29 = scalar_lea.sflag [#allocation5], 1
    %30 = vsyncpa %s29, 0
    loop: start=0, step=1, limit=10
    $region2: #{bert_layers.1} parent=1 // loop_pre_header
      _
    $region3: #{bert_layers.1} parent=1 // loop_header
      %s32 = sphi 0, %s36
      %p33 = scmp.ge.s32.totalorder %s32, 10
      %s40 = sphi 0, %s40
      %s42 = sphi 0, %s40
      %s43 = sphi 0, %s42
      %s57 = sphi 0, %s43
      %s63 = sphi 0, %s65
      %s66 = sphi 0, %s63
      %s67 = sphi 0, %s66
      %s83 = sphi 0, %s67
      %s89 = sphi 0, %s91
      %s92 = sphi 0, %s89
      %s93 = sphi 0, %s92
      %s109 = sphi 0, %s93
      %s115 = sphi 0, %s117
      %s118 = sphi 0, %s115
      %s119 = sphi 0, %s118
      %s135 = sphi 0, %s119
      %s141 = sphi 0, %s143
      %s144 = sphi 0, %s141
      %s145 = sphi 0, %s144
      %s161 = sphi 0, %s145
      %s167 = sphi 0, %s169
      %s170 = sphi 0, %s167
      %s171 = sphi 0, %s170
      %s187 = sphi 0, %s171
      %s193 = sphi 0, %s195
      %s196 = sphi 0, %s193
      %s197 = sphi 0, %s196
      %s213 = sphi 0, %s197
      %s219 = sphi 0, %s221
      %s222 = sphi 0, %s219
      %s223 = sphi 0, %s222
      %s239 = sphi 0, %s223
      %s245 = sphi 0, %s247
      %s248 = sphi 0, %s245
      %s249 = sphi 0, %s248
      %s265 = sphi 0, %s249
      %s271 = sphi 0, %s273
      %s274 = sphi 0, %s271
      %s275 = sphi 0, %s274
      %s291 = sphi 0, %s275
      %s297 = sphi 0, %s299
      %s300 = sphi 0, %s297
      %s301 = sphi 0, %s300
      %s317 = sphi 0, %s301
      %s323 = sphi 0, %s325
      %s326 = sphi 0, %s323
      %s327 = sphi 0, %s326
      %s343 = sphi 0, %s327
      %s349 = sphi 0, %s351
      %s352 = sphi 0, %s349
      %s353 = sphi 0, %s352
      %s369 = sphi 0, %s353
      %s375 = sphi 0, %s377
      %s378 = sphi 0, %s375
      %s379 = sphi 0, %s378
      %s395 = sphi 0, %s379
    $region4: #{bert_layers.1} parent=1 // loop_header_branch
      %35 = sbr.rel (%p33) target = $region8
    $region5: #{bert_layers.1} parent=1 // loop_body
      %s37 = ssub.s32 %s32, 1
      %s38 = ssub.s32 %s32, 2
      %s39 = sadd.s32 %s32, 1
      %s41 = sadd.s32 %s40, 1
      %p44 = scmp.eq.s32.totalorder %s32, 7
      %p45 = scmp.ne.s32.totalorder %s40, %s42
      %p46 = scmp.eq.s32.totalorder %s32, 0
      %p47 = por %p45, %p46
      %p48 = scmp.ne.s32.totalorder %s40, %s42
      %p49 = scmp.eq.s32.totalorder %s37, 7
      %p50 = por %p48, %p49
      %p51 = scmp.ne.s32.totalorder %s42, %s43
      %p52 = scmp.eq.s32.totalorder %s37, 0
      %p53 = por %p51, %p52
      %p54 = scmp.ne.s32.totalorder %s42, %s43
      %p55 = scmp.eq.s32.totalorder %s38, 7
      %p56 = por %p54, %p55
      %p58 = scmp.ne.s32.totalorder %s43, %s57
      %p59 = scmp.eq.s32.totalorder %s38, 0
      %p60 = por %p58, %p59
      %s61 = ssub.s32 %s32, %s39
      %p62 = scmp.eq.s32.totalorder %s61, 0
      %s64 = sadd.s32 %s63, 1
      %s65 = scalar_select %p62, %s63, %s64
      %p68 = pneg %p62
      %p69 = scmp.eq.s32.totalorder %s32, 7
      %p70 = por %p68, %p69
      %p71 = scmp.ne.s32.totalorder %s63, %s66
      %p72 = scmp.eq.s32.totalorder %s32, 0
      %p73 = por %p71, %p72
      %p74 = scmp.ne.s32.totalorder %s63, %s66
      %p75 = scmp.eq.s32.totalorder %s37, 7
      %p76 = por %p74, %p75
      %p77 = scmp.ne.s32.totalorder %s66, %s67
      %p78 = scmp.eq.s32.totalorder %s37, 0
      %p79 = por %p77, %p78
      %p80 = scmp.ne.s32.totalorder %s66, %s67
      %p81 = scmp.eq.s32.totalorder %s38, 7
      %p82 = por %p80, %p81
      %p84 = scmp.ne.s32.totalorder %s67, %s83
      %p85 = scmp.eq.s32.totalorder %s38, 0
      %p86 = por %p84, %p85
      %s87 = ssub.s32 %s32, %s39
      %p88 = scmp.eq.s32.totalorder %s87, 0
      %s90 = sadd.s32 %s89, 1
      %s91 = scalar_select %p88, %s89, %s90
      %p94 = pneg %p88
      %p95 = scmp.eq.s32.totalorder %s32, 7
      %p96 = por %p94, %p95
      %p97 = scmp.ne.s32.totalorder %s89, %s92
      %p98 = scmp.eq.s32.totalorder %s32, 0
      %p99 = por %p97, %p98
      %p100 = scmp.ne.s32.totalorder %s89, %s92
      %p101 = scmp.eq.s32.totalorder %s37, 7
      %p102 = por %p100, %p101
      %p103 = scmp.ne.s32.totalorder %s92, %s93
      %p104 = scmp.eq.s32.totalorder %s37, 0
      %p105 = por %p103, %p104
      %p106 = scmp.ne.s32.totalorder %s92, %s93
      %p107 = scmp.eq.s32.totalorder %s38, 7
      %p108 = por %p106, %p107
      %p110 = scmp.ne.s32.totalorder %s93, %s109
      %p111 = scmp.eq.s32.totalorder %s38, 0
      %p112 = por %p110, %p111
      %s113 = ssub.s32 %s32, %s39
      %p114 = scmp.eq.s32.totalorder %s113, 0
      %s116 = sadd.s32 %s115, 1
      %s117 = scalar_select %p114, %s115, %s116
      %p120 = pneg %p114
      %p121 = scmp.eq.s32.totalorder %s32, 7
      %p122 = por %p120, %p121
      %p123 = scmp.ne.s32.totalorder %s115, %s118
      %p124 = scmp.eq.s32.totalorder %s32, 0
      %p125 = por %p123, %p124
      %p126 = scmp.ne.s32.totalorder %s115, %s118
      %p127 = scmp.eq.s32.totalorder %s37, 7
      %p128 = por %p126, %p127
      %p129 = scmp.ne.s32.totalorder %s118, %s119
      %p130 = scmp.eq.s32.totalorder %s37, 0
      %p131 = por %p129, %p130
      %p132 = scmp.ne.s32.totalorder %s118, %s119
      %p133 = scmp.eq.s32.totalorder %s38, 7
      %p134 = por %p132, %p133
      %p136 = scmp.ne.s32.totalorder %s119, %s135
      %p137 = scmp.eq.s32.totalorder %s38, 0
      %p138 = por %p136, %p137
      %s139 = ssub.s32 %s32, %s39
      %p140 = scmp.eq.s32.totalorder %s139, 0
      %s142 = sadd.s32 %s141, 1
      %s143 = scalar_select %p140, %s141, %s142
      %p146 = pneg %p140
      %p147 = scmp.eq.s32.totalorder %s32, 7
      %p148 = por %p146, %p147
      %p149 = scmp.ne.s32.totalorder %s141, %s144
      %p150 = scmp.eq.s32.totalorder %s32, 0
      %p151 = por %p149, %p150
      %p152 = scmp.ne.s32.totalorder %s141, %s144
      %p153 = scmp.eq.s32.totalorder %s37, 7
      %p154 = por %p152, %p153
      %p155 = scmp.ne.s32.totalorder %s144, %s145
      %p156 = scmp.eq.s32.totalorder %s37, 0
      %p157 = por %p155, %p156
      %p158 = scmp.ne.s32.totalorder %s144, %s145
      %p159 = scmp.eq.s32.totalorder %s38, 7
      %p160 = por %p158, %p159
      %p162 = scmp.ne.s32.totalorder %s145, %s161
      %p163 = scmp.eq.s32.totalorder %s38, 0
      %p164 = por %p162, %p163
      %s165 = ssub.s32 %s32, %s39
      %p166 = scmp.eq.s32.totalorder %s165, 0
      %s168 = sadd.s32 %s167, 1
      %s169 = scalar_select %p166, %s167, %s168
      %p172 = pneg %p166
      %p173 = scmp.eq.s32.totalorder %s32, 7
      %p174 = por %p172, %p173
      %p175 = scmp.ne.s32.totalorder %s167, %s170
      %p176 = scmp.eq.s32.totalorder %s32, 0
      %p177 = por %p175, %p176
      %p178 = scmp.ne.s32.totalorder %s167, %s170
      %p179 = scmp.eq.s32.totalorder %s37, 7
      %p180 = por %p178, %p179
      %p181 = scmp.ne.s32.totalorder %s170, %s171
      %p182 = scmp.eq.s32.totalorder %s37, 0
      %p183 = por %p181, %p182
      %p184 = scmp.ne.s32.totalorder %s170, %s171
      %p185 = scmp.eq.s32.totalorder %s38, 7
      %p186 = por %p184, %p185
      %p188 = scmp.ne.s32.totalorder %s171, %s187
      %p189 = scmp.eq.s32.totalorder %s38, 0
      %p190 = por %p188, %p189
      %s191 = ssub.s32 %s32, %s39
      %p192 = scmp.eq.s32.totalorder %s191, 0
      %s194 = sadd.s32 %s193, 1
      %s195 = scalar_select %p192, %s193, %s194
      %p198 = pneg %p192
      %p199 = scmp.eq.s32.totalorder %s32, 7
      %p200 = por %p198, %p199
      %p201 = scmp.ne.s32.totalorder %s193, %s196
      %p202 = scmp.eq.s32.totalorder %s32, 0
      %p203 = por %p201, %p202
      %p204 = scmp.ne.s32.totalorder %s193, %s196
      %p205 = scmp.eq.s32.totalorder %s37, 7
      %p206 = por %p204, %p205
      %p207 = scmp.ne.s32.totalorder %s196, %s197
      %p208 = scmp.eq.s32.totalorder %s37, 0
      %p209 = por %p207, %p208
      %p210 = scmp.ne.s32.totalorder %s196, %s197
      %p211 = scmp.eq.s32.totalorder %s38, 7
      %p212 = por %p210, %p211
      %p214 = scmp.ne.s32.totalorder %s197, %s213
      %p215 = scmp.eq.s32.totalorder %s38, 0
      %p216 = por %p214, %p215
      %s217 = ssub.s32 %s32, %s39
      %p218 = scmp.eq.s32.totalorder %s217, 0
      %s220 = sadd.s32 %s219, 1
      %s221 = scalar_select %p218, %s219, %s220
      %p224 = pneg %p218
      %p225 = scmp.eq.s32.totalorder %s32, 7
      %p226 = por %p224, %p225
      %p227 = scmp.ne.s32.totalorder %s219, %s222
      %p228 = scmp.eq.s32.totalorder %s32, 0
      %p229 = por %p227, %p228
      %p230 = scmp.ne.s32.totalorder %s219, %s222
      %p231 = scmp.eq.s32.totalorder %s37, 7
      %p232 = por %p230, %p231
      %p233 = scmp.ne.s32.totalorder %s222, %s223
      %p234 = scmp.eq.s32.totalorder %s37, 0
      %p235 = por %p233, %p234
      %p236 = scmp.ne.s32.totalorder %s222, %s223
      %p237 = scmp.eq.s32.totalorder %s38, 7
      %p238 = por %p236, %p237
      %p240 = scmp.ne.s32.totalorder %s223, %s239
      %p241 = scmp.eq.s32.totalorder %s38, 0
      %p242 = por %p240, %p241
      %s243 = ssub.s32 %s32, %s39
      %p244 = scmp.eq.s32.totalorder %s243, 0
      %s246 = sadd.s32 %s245, 1
      %s247 = scalar_select %p244, %s245, %s246
      %p250 = pneg %p244
      %p251 = scmp.eq.s32.totalorder %s32, 7
      %p252 = por %p250, %p251
      %p253 = scmp.ne.s32.totalorder %s245, %s248
      %p254 = scmp.eq.s32.totalorder %s32, 0
      %p255 = por %p253, %p254
      %p256 = scmp.ne.s32.totalorder %s245, %s248
      %p257 = scmp.eq.s32.totalorder %s37, 7
      %p258 = por %p256, %p257
      %p259 = scmp.ne.s32.totalorder %s248, %s249
      %p260 = scmp.eq.s32.totalorder %s37, 0
      %p261 = por %p259, %p260
      %p262 = scmp.ne.s32.totalorder %s248, %s249
      %p263 = scmp.eq.s32.totalorder %s38, 7
      %p264 = por %p262, %p263
      %p266 = scmp.ne.s32.totalorder %s249, %s265
      %p267 = scmp.eq.s32.totalorder %s38, 0
      %p268 = por %p266, %p267
      %s269 = ssub.s32 %s32, %s39
      %p270 = scmp.eq.s32.totalorder %s269, 0
      %s272 = sadd.s32 %s271, 1
      %s273 = scalar_select %p270, %s271, %s272
      %p276 = pneg %p270
      %p277 = scmp.eq.s32.totalorder %s32, 7
      %p278 = por %p276, %p277
      %p279 = scmp.ne.s32.totalorder %s271, %s274
      %p280 = scmp.eq.s32.totalorder %s32, 0
      %p281 = por %p279, %p280
      %p282 = scmp.ne.s32.totalorder %s271, %s274
      %p283 = scmp.eq.s32.totalorder %s37, 7
      %p284 = por %p282, %p283
      %p285 = scmp.ne.s32.totalorder %s274, %s275
      %p286 = scmp.eq.s32.totalorder %s37, 0
      %p287 = por %p285, %p286
      %p288 = scmp.ne.s32.totalorder %s274, %s275
      %p289 = scmp.eq.s32.totalorder %s38, 7
      %p290 = por %p288, %p289
      %p292 = scmp.ne.s32.totalorder %s275, %s291
      %p293 = scmp.eq.s32.totalorder %s38, 0
      %p294 = por %p292, %p293
      %s295 = ssub.s32 %s32, %s39
      %p296 = scmp.eq.s32.totalorder %s295, 0
      %s298 = sadd.s32 %s297, 1
      %s299 = scalar_select %p296, %s297, %s298
      %p302 = pneg %p296
      %p303 = scmp.eq.s32.totalorder %s32, 7
      %p304 = por %p302, %p303
      %p305 = scmp.ne.s32.totalorder %s297, %s300
      %p306 = scmp.eq.s32.totalorder %s32, 0
      %p307 = por %p305, %p306
      %p308 = scmp.ne.s32.totalorder %s297, %s300
      %p309 = scmp.eq.s32.totalorder %s37, 7
      %p310 = por %p308, %p309
      %p311 = scmp.ne.s32.totalorder %s300, %s301
      %p312 = scmp.eq.s32.totalorder %s37, 0
      %p313 = por %p311, %p312
      %p314 = scmp.ne.s32.totalorder %s300, %s301
      %p315 = scmp.eq.s32.totalorder %s38, 7
      %p316 = por %p314, %p315
      %p318 = scmp.ne.s32.totalorder %s301, %s317
      %p319 = scmp.eq.s32.totalorder %s38, 0
      %p320 = por %p318, %p319
      %s321 = ssub.s32 %s32, %s39
      %p322 = scmp.eq.s32.totalorder %s321, 0
      %s324 = sadd.s32 %s323, 1
      %s325 = scalar_select %p322, %s323, %s324
      %p328 = pneg %p322
      %p329 = scmp.eq.s32.totalorder %s32, 7
      %p330 = por %p328, %p329
      %p331 = scmp.ne.s32.totalorder %s323, %s326
      %p332 = scmp.eq.s32.totalorder %s32, 0
      %p333 = por %p331, %p332
      %p334 = scmp.ne.s32.totalorder %s323, %s326
      %p335 = scmp.eq.s32.totalorder %s37, 7
      %p336 = por %p334, %p335
      %p337 = scmp.ne.s32.totalorder %s326, %s327
      %p338 = scmp.eq.s32.totalorder %s37, 0
      %p339 = por %p337, %p338
      %p340 = scmp.ne.s32.totalorder %s326, %s327
      %p341 = scmp.eq.s32.totalorder %s38, 7
      %p342 = por %p340, %p341
      %p344 = scmp.ne.s32.totalorder %s327, %s343
      %p345 = scmp.eq.s32.totalorder %s38, 0
      %p346 = por %p344, %p345
      %s347 = ssub.s32 %s32, %s39
      %p348 = scmp.eq.s32.totalorder %s347, 0
      %s350 = sadd.s32 %s349, 1
      %s351 = scalar_select %p348, %s349, %s350
      %p354 = pneg %p348
      %p355 = scmp.eq.s32.totalorder %s32, 7
      %p356 = por %p354, %p355
      %p357 = scmp.ne.s32.totalorder %s349, %s352
      %p358 = scmp.eq.s32.totalorder %s32, 0
      %p359 = por %p357, %p358
      %p360 = scmp.ne.s32.totalorder %s349, %s352
      %p361 = scmp.eq.s32.totalorder %s37, 7
      %p362 = por %p360, %p361
      %p363 = scmp.ne.s32.totalorder %s352, %s353
      %p364 = scmp.eq.s32.totalorder %s37, 0
      %p365 = por %p363, %p364
      %p366 = scmp.ne.s32.totalorder %s352, %s353
      %p367 = scmp.eq.s32.totalorder %s38, 7
      %p368 = por %p366, %p367
      %p370 = scmp.ne.s32.totalorder %s353, %s369
      %p371 = scmp.eq.s32.totalorder %s38, 0
      %p372 = por %p370, %p371
      %s373 = ssub.s32 %s32, %s39
      %p374 = scmp.eq.s32.totalorder %s373, 0
      %s376 = sadd.s32 %s375, 1
      %s377 = scalar_select %p374, %s375, %s376
      %p380 = pneg %p374
      %p381 = scmp.eq.s32.totalorder %s32, 7
      %p382 = por %p380, %p381
      %p383 = scmp.ne.s32.totalorder %s375, %s378
      %p384 = scmp.eq.s32.totalorder %s32, 0
      %p385 = por %p383, %p384
      %p386 = scmp.ne.s32.totalorder %s375, %s378
      %p387 = scmp.eq.s32.totalorder %s37, 7
      %p388 = por %p386, %p387
      %p389 = scmp.ne.s32.totalorder %s378, %s379
      %p390 = scmp.eq.s32.totalorder %s37, 0
      %p391 = por %p389, %p390
      %p392 = scmp.ne.s32.totalorder %s378, %s379
      %p393 = scmp.eq.s32.totalorder %s38, 7
      %p394 = por %p392, %p393
      %p396 = scmp.ne.s32.totalorder %s379, %s395
      %p397 = scmp.eq.s32.totalorder %s38, 0
      %p398 = por %p396, %p397
      %p399 = scmp.le.s32.totalorder 1, %s32
      %p400 = scmp.lt.s32.totalorder %s32, 9
      %p401 = pnand %p399, %p400
      %p402 = pneg %p401
      // Predicated region
      $region9: #{bert_layers.1} parent=5 // pred_check
        _
      $region10: #{bert_layers.1} parent=5 // pred_check_branch
        %404 = sbr.rel (%p401) target = $region12
      $region11: #{bert_layers.1} parent=5 // pred_region
        %s405 = ssub.s32 %s32, 1
        // Predicated region
        $region13: #{bert_layers.1} parent=11 // pred_check
          %p406 = pneg %p53
        $region14: #{bert_layers.1} parent=11 // pred_check_branch
          %408 = sbr.rel (%p406) target = $region16
        $region15: #{bert_layers.1} parent=11 // pred_region
          %s410 = ssub.s32 128, 128
          %411 = vsyncadd [#allocation4], %s410
          %s413 = sshll.u32 [#allocation3], 4
          %s414 = int_to_ptr.vmem [resolvable:$true] %s413
          %416 = dma.hbm_to_vmem [thread:$0]  %s0, 128, %s414, [#allocation4]
        $region16: #{bert_layers.1} parent=11 // pred_fallthru
          _
      $region12: #{bert_layers.1} parent=5 // pred_fallthru
        _
      %p417 = scmp.lt.s32.totalorder %s32, 8
      // Predicated region
      $region17: #{bert_layers.1} parent=5 // pred_check
        %p418 = pneg %p417
      $region18: #{bert_layers.1} parent=5 // pred_check_branch
        %420 = sbr.rel (%p418) target = $region20
      $region19: #{bert_layers.1} parent=5 // pred_region
        // Predicated region
        $region21: #{bert_layers.1} parent=19 // pred_check
          %p421 = pneg %p73
        $region22: #{bert_layers.1} parent=19 // pred_check_branch
          %423 = sbr.rel (%p421) target = $region24
        $region23: #{bert_layers.1} parent=19 // pred_region
          %p424 = scmp.lt.s32.totalorder %s32, 7
          %s425 = scalar_select %p424, %s32, 7
          %s426 = smul.addr %s425, 4
          %s427 = smul.addr %s426, 8
          %s428 = scalar_lea.vmem %s1, %s427
        $region24: #{bert_layers.1} parent=19 // pred_fallthru
          _
        // Predicated region
        $region25: #{bert_layers.1} parent=19 // pred_check
          %p429 = pneg %p99
        $region26: #{bert_layers.1} parent=19 // pred_check_branch
          %431 = sbr.rel (%p429) target = $region28
        $region27: #{bert_layers.1} parent=19 // pred_region
          %s432 = sand.u32 %s32, 1
          %s433 = scalar_lea.sflag [#allocation7], %s432
          %s434 = sand.u32 %s89, 1
          %s435 = scalar_lea.vmem [#allocation6], %s434
          %s437 = ssub.s32 16, 16
          %438 = vsyncadd %s433, %s437
          %s439 = smul.addr %s32, 16
          %s440 = scalar_lea.hbm %s2, %s439
          %s442 = sshll.u32 %s435, 4
          %s443 = int_to_ptr.vmem [resolvable:$true] %s442
          %445 = dma.hbm_to_vmem [thread:$0]  %s440, 16, %s443, %s433
        $region28: #{bert_layers.1} parent=19 // pred_fallthru
          _
        // Predicated region
        $region29: #{bert_layers.1} parent=19 // pred_check
          %p446 = pneg %p125
        $region30: #{bert_layers.1} parent=19 // pred_check_branch
          %448 = sbr.rel (%p446) target = $region32
        $region31: #{bert_layers.1} parent=19 // pred_region
          %p449 = scmp.lt.s32.totalorder %s32, 7
          %s450 = scalar_select %p449, %s32, 7
          %s451 = smul.addr %s450, 4
          %s452 = smul.addr %s451, 8
          %s453 = scalar_lea.vmem %s3, %s452
        $region32: #{bert_layers.1} parent=19 // pred_fallthru
          _
        // Predicated region
        $region33: #{bert_layers.1} parent=19 // pred_check
          %p454 = pneg %p151
        $region34: #{bert_layers.1} parent=19 // pred_check_branch
          %456 = sbr.rel (%p454) target = $region36
        $region35: #{bert_layers.1} parent=19 // pred_region
          %s457 = sand.u32 %s32, 1
          %s458 = scalar_lea.sflag [#allocation7], %s457
          %s459 = sand.u32 %s141, 1
          %s460 = scalar_lea.vmem [#allocation8], %s459
          %s462 = ssub.s32 16, 16
          %463 = vsyncadd %s458, %s462
          %s464 = smul.addr %s32, 16
          %s465 = scalar_lea.hbm %s4, %s464
          %s467 = sshll.u32 %s460, 4
          %s468 = int_to_ptr.vmem [resolvable:$true] %s467
          %470 = dma.hbm_to_vmem [thread:$0]  %s465, 16, %s468, %s458
        $region36: #{bert_layers.1} parent=19 // pred_fallthru
          _
        // Predicated region
        $region37: #{bert_layers.1} parent=19 // pred_check
          %p471 = pneg %p177
        $region38: #{bert_layers.1} parent=19 // pred_check_branch
          %473 = sbr.rel (%p471) target = $region40
        $region39: #{bert_layers.1} parent=19 // pred_region
          %p474 = scmp.lt.s32.totalorder %s32, 7
          %s475 = scalar_select %p474, %s32, 7
          %s476 = scalar_lea.vmem %s5, %s475
        $region40: #{bert_layers.1} parent=19 // pred_fallthru
          _
        // Predicated region
        $region41: #{bert_layers.1} parent=19 // pred_check
          %p477 = pneg %p203
        $region42: #{bert_layers.1} parent=19 // pred_check_branch
          %479 = sbr.rel (%p477) target = $region44
        $region43: #{bert_layers.1} parent=19 // pred_region
          %s480 = sand.u32 %s32, 1
          %s481 = scalar_lea.sflag [#allocation10], %s480
          %s482 = sand.u32 %s193, 1
          %s483 = scalar_lea.vmem [#allocation9], %s482
          %s485 = ssub.s32 16, 16
          %486 = vsyncadd %s481, %s485
          %s487 = smul.addr %s32, 16
          %s488 = scalar_lea.hbm %s6, %s487
          %s490 = sshll.u32 %s483, 4
          %s491 = int_to_ptr.vmem [resolvable:$true] %s490
          %493 = dma.hbm_to_vmem [thread:$0]  %s488, 16, %s491, %s481
        $region44: #{bert_layers.1} parent=19 // pred_fallthru
          _
        // Predicated region
        $region45: #{bert_layers.1} parent=19 // pred_check
          %p494 = pneg %p229
        $region46: #{bert_layers.1} parent=19 // pred_check_branch
          %496 = sbr.rel (%p494) target = $region48
        $region47: #{bert_layers.1} parent=19 // pred_region
          %p497 = scmp.lt.s32.totalorder %s32, 7
          %s498 = scalar_select %p497, %s32, 7
          %s499 = smul.addr %s498, 4
          %s500 = smul.addr %s499, 8
          %s501 = scalar_lea.vmem %s7, %s500
        $region48: #{bert_layers.1} parent=19 // pred_fallthru
          _
        // Predicated region
        $region49: #{bert_layers.1} parent=19 // pred_check
          %p502 = pneg %p255
        $region50: #{bert_layers.1} parent=19 // pred_check_branch
          %504 = sbr.rel (%p502) target = $region52
        $region51: #{bert_layers.1} parent=19 // pred_region
          %s505 = sand.u32 %s32, 1
          %s506 = scalar_lea.sflag [#allocation10], %s505
          %s507 = sand.u32 %s245, 1
          %s508 = scalar_lea.vmem [#allocation11], %s507
          %s510 = ssub.s32 16, 16
          %511 = vsyncadd %s506, %s510
          %s512 = smul.addr %s32, 16
          %s513 = scalar_lea.hbm %s8, %s512
          %s515 = sshll.u32 %s508, 4
          %s516 = int_to_ptr.vmem [resolvable:$true] %s515
          %518 = dma.hbm_to_vmem [thread:$0]  %s513, 16, %s516, %s506
        $region52: #{bert_layers.1} parent=19 // pred_fallthru
          _
        // Predicated region
        $region53: #{bert_layers.1} parent=19 // pred_check
          %p519 = pneg %p281
        $region54: #{bert_layers.1} parent=19 // pred_check_branch
          %521 = sbr.rel (%p519) target = $region56
        $region55: #{bert_layers.1} parent=19 // pred_region
          %p522 = scmp.lt.s32.totalorder %s32, 7
          %s523 = scalar_select %p522, %s32, 7
          %s524 = smul.addr %s523, 8
          %s525 = smul.addr %s524, 8
          %s526 = scalar_lea.vmem %s9, %s525
        $region56: #{bert_layers.1} parent=19 // pred_fallthru
          _
        // Predicated region
        $region57: #{bert_layers.1} parent=19 // pred_check
          %p527 = pneg %p307
        $region58: #{bert_layers.1} parent=19 // pred_check_branch
          %529 = sbr.rel (%p527) target = $region60
        $region59: #{bert_layers.1} parent=19 // pred_region
          %p530 = scmp.lt.s32.totalorder %s32, 7
          %s531 = scalar_select %p530, %s32, 7
          %s532 = scalar_lea.vmem %s10, %s531
        $region60: #{bert_layers.1} parent=19 // pred_fallthru
          _
        // Predicated region
        $region61: #{bert_layers.1} parent=19 // pred_check
          %p533 = pneg %p333
        $region62: #{bert_layers.1} parent=19 // pred_check_branch
          %535 = sbr.rel (%p533) target = $region64
        $region63: #{bert_layers.1} parent=19 // pred_region
          %s536 = sand.u32 %s32, 1
          %s537 = scalar_lea.sflag [#allocation13], %s536
          %s538 = sand.u32 %s323, 1
          %s539 = scalar_lea.vmem [#allocation12], %s538
          %s541 = ssub.s32 16, 16
          %542 = vsyncadd %s537, %s541
          %s543 = smul.addr %s32, 16
          %s544 = scalar_lea.hbm %s11, %s543
          %s546 = sshll.u32 %s539, 4
          %s547 = int_to_ptr.vmem [resolvable:$true] %s546
          %549 = dma.hbm_to_vmem [thread:$0]  %s544, 16, %s547, %s537
        $region64: #{bert_layers.1} parent=19 // pred_fallthru
          _
        // Predicated region
        $region65: #{bert_layers.1} parent=19 // pred_check
          %p550 = pneg %p359
        $region66: #{bert_layers.1} parent=19 // pred_check_branch
          %552 = sbr.rel (%p550) target = $region68
        $region67: #{bert_layers.1} parent=19 // pred_region
          %s553 = sand.u32 %s32, 1
          %s554 = scalar_lea.sflag [#allocation13], %s553
          %s555 = sand.u32 %s349, 1
          %s556 = scalar_lea.vmem [#allocation14], %s555
          %s558 = ssub.s32 16, 16
          %559 = vsyncadd %s554, %s558
          %s560 = smul.addr %s32, 16
          %s561 = scalar_lea.hbm %s12, %s560
          %s563 = sshll.u32 %s556, 4
          %s564 = int_to_ptr.vmem [resolvable:$true] %s563
          %566 = dma.hbm_to_vmem [thread:$0]  %s561, 16, %s564, %s554
        $region68: #{bert_layers.1} parent=19 // pred_fallthru
          _
      $region20: #{bert_layers.1} parent=5 // pred_fallthru
        _
      %p567 = scmp.le.s32.totalorder 1, %s32
      %p568 = scmp.lt.s32.totalorder %s32, 9
      %p569 = pnand %p567, %p568
      %p570 = pneg %p569
      // Predicated region
      $region69: #{bert_layers.1} parent=5 // pred_check
        _
      $region70: #{bert_layers.1} parent=5 // pred_check_branch
        %572 = sbr.rel (%p569) target = $region72
      $region71: #{bert_layers.1} parent=5 // pred_region
        %s573 = ssub.s32 %s32, 1
        // Predicated region
        $region73: #{bert_layers.1} parent=71 // pred_check
          %p574 = pneg %p53
        $region74: #{bert_layers.1} parent=71 // pred_check_branch
          %576 = sbr.rel (%p574) target = $region76
        $region75: #{bert_layers.1} parent=71 // pred_region
          %577 = dma.done [#allocation4], 128
        $region76: #{bert_layers.1} parent=71 // pred_fallthru
          _
        %s578 = sand.u32 %s37, 1
        %s579 = scalar_lea.sflag [#allocation7], %s578
        %s580 = sand.u32 %s92, 1
        %s581 = scalar_lea.vmem [#allocation6], %s580
        // Predicated region
        $region77: #{bert_layers.1} parent=71 // pred_check
          %p582 = pneg %p105
        $region78: #{bert_layers.1} parent=71 // pred_check_branch
          %584 = sbr.rel (%p582) target = $region80
        $region79: #{bert_layers.1} parent=71 // pred_region
          %585 = dma.done %s579, 16
        $region80: #{bert_layers.1} parent=71 // pred_fallthru
          _
        %s586 = sand.u32 %s37, 1
        %s587 = scalar_lea.sflag [#allocation7], %s586
        %s588 = sand.u32 %s144, 1
        %s589 = scalar_lea.vmem [#allocation8], %s588
        // Predicated region
        $region81: #{bert_layers.1} parent=71 // pred_check
          %p590 = pneg %p157
        $region82: #{bert_layers.1} parent=71 // pred_check_branch
          %592 = sbr.rel (%p590) target = $region84
        $region83: #{bert_layers.1} parent=71 // pred_region
          %593 = dma.done %s587, 16
        $region84: #{bert_layers.1} parent=71 // pred_fallthru
          _
        %s594 = sand.u32 %s37, 1
        %s595 = scalar_lea.sflag [#allocation10], %s594
        %s596 = sand.u32 %s196, 1
        %s597 = scalar_lea.vmem [#allocation9], %s596
        // Predicated region
        $region85: #{bert_layers.1} parent=71 // pred_check
          %p598 = pneg %p209
        $region86: #{bert_layers.1} parent=71 // pred_check_branch
          %600 = sbr.rel (%p598) target = $region88
        $region87: #{bert_layers.1} parent=71 // pred_region
          %601 = dma.done %s595, 16
        $region88: #{bert_layers.1} parent=71 // pred_fallthru
          _
        %s602 = sand.u32 %s37, 1
        %s603 = scalar_lea.sflag [#allocation10], %s602
        %s604 = sand.u32 %s248, 1
        %s605 = scalar_lea.vmem [#allocation11], %s604
        // Predicated region
        $region89: #{bert_layers.1} parent=71 // pred_check
          %p606 = pneg %p261
        $region90: #{bert_layers.1} parent=71 // pred_check_branch
          %608 = sbr.rel (%p606) target = $region92
        $region91: #{bert_layers.1} parent=71 // pred_region
          %609 = dma.done %s603, 16
        $region92: #{bert_layers.1} parent=71 // pred_fallthru
          _
        %s610 = sand.u32 %s37, 1
        %s611 = scalar_lea.sflag [#allocation13], %s610
        %s612 = sand.u32 %s326, 1
        %s613 = scalar_lea.vmem [#allocation12], %s612
        // Predicated region
        $region93: #{bert_layers.1} parent=71 // pred_check
          %p614 = pneg %p339
        $region94: #{bert_layers.1} parent=71 // pred_check_branch
          %616 = sbr.rel (%p614) target = $region96
        $region95: #{bert_layers.1} parent=71 // pred_region
          %617 = dma.done %s611, 16
        $region96: #{bert_layers.1} parent=71 // pred_fallthru
          _
        %s618 = sand.u32 %s37, 1
        %s619 = scalar_lea.sflag [#allocation13], %s618
        %s620 = sand.u32 %s352, 1
        %s621 = scalar_lea.vmem [#allocation14], %s620
        // Predicated region
        $region97: #{bert_layers.1} parent=71 // pred_check
          %p622 = pneg %p365
        $region98: #{bert_layers.1} parent=71 // pred_check_branch
          %624 = sbr.rel (%p622) target = $region100
        $region99: #{bert_layers.1} parent=71 // pred_region
          %625 = dma.done %s619, 16
        $region100: #{bert_layers.1} parent=71 // pred_fallthru
          _
        %p626 = pneg %p53
        %p627 = pneg %p50
        %p628 = scmp.lt.s32.totalorder %s37, 7
        %s629 = scalar_select %p628, %s37, 7
        %s630 = smul.addr %s629, 4
        %s631 = smul.addr %s630, 8
        %s632 = scalar_lea.vmem %s1, %s631
        %p633 = pneg %p79
        %p634 = pneg %p76
        %s635 = sand.u32 %s37, 1
        %s636 = scalar_lea.sflag [#allocation7], %s635
        %s637 = sand.u32 %s92, 1
        %s638 = scalar_lea.vmem [#allocation6], %s637
        %p639 = pneg %p105
        %p640 = pneg %p102
        %p641 = scmp.lt.s32.totalorder %s37, 7
        %s642 = scalar_select %p641, %s37, 7
        %s643 = smul.addr %s642, 4
        %s644 = smul.addr %s643, 8
        %s645 = scalar_lea.vmem %s3, %s644
        %p646 = pneg %p131
        %p647 = pneg %p128
        %s648 = sand.u32 %s37, 1
        %s649 = scalar_lea.sflag [#allocation7], %s648
        %s650 = sand.u32 %s144, 1
        %s651 = scalar_lea.vmem [#allocation8], %s650
        %p652 = pneg %p157
        %p653 = pneg %p154
        %p654 = scmp.lt.s32.totalorder %s37, 7
        %s655 = scalar_select %p654, %s37, 7
        %s656 = scalar_lea.vmem %s5, %s655
        %p657 = pneg %p183
        %p658 = pneg %p180
        %s659 = sand.u32 %s37, 1
        %s660 = scalar_lea.sflag [#allocation10], %s659
        %s661 = sand.u32 %s196, 1
        %s662 = scalar_lea.vmem [#allocation9], %s661
        %p663 = pneg %p209
        %p664 = pneg %p206
        %p665 = scmp.lt.s32.totalorder %s37, 7
        %s666 = scalar_select %p665, %s37, 7
        %s667 = smul.addr %s666, 4
        %s668 = smul.addr %s667, 8
        %s669 = scalar_lea.vmem %s7, %s668
        %p670 = pneg %p235
        %p671 = pneg %p232
        %s672 = sand.u32 %s37, 1
        %s673 = scalar_lea.sflag [#allocation10], %s672
        %s674 = sand.u32 %s248, 1
        %s675 = scalar_lea.vmem [#allocation11], %s674
        %p676 = pneg %p261
        %p677 = pneg %p258
        %p678 = scmp.lt.s32.totalorder %s37, 7
        %s679 = scalar_select %p678, %s37, 7
        %s680 = smul.addr %s679, 8
        %s681 = smul.addr %s680, 8
        %s682 = scalar_lea.vmem %s9, %s681
        %p683 = pneg %p287
        %p684 = pneg %p284
        %p685 = scmp.lt.s32.totalorder %s37, 7
        %s686 = scalar_select %p685, %s37, 7
        %s687 = scalar_lea.vmem %s10, %s686
        %p688 = pneg %p313
        %p689 = pneg %p310
        %s690 = sand.u32 %s37, 1
        %s691 = scalar_lea.sflag [#allocation13], %s690
        %s692 = sand.u32 %s326, 1
        %s693 = scalar_lea.vmem [#allocation12], %s692
        %p694 = pneg %p339
        %p695 = pneg %p336
        %s696 = sand.u32 %s37, 1
        %s697 = scalar_lea.sflag [#allocation13], %s696
        %s698 = sand.u32 %s352, 1
        %s699 = scalar_lea.vmem [#allocation14], %s698
        %p700 = pneg %p365
        %p701 = pneg %p362
        %p702 = pneg %p391
        %p703 = pneg %p388
        %s704 = sand.u32 %s378, 1
        %s705 = scalar_lea.sflag [#allocation5], %s704
        %s706 = sand.u32 %s378, 1
        %s707 = smul.addr %s706, 8
        %s708 = scalar_lea.vmem [#allocation15], %s707
        %p709 = scmp.lt.s32.totalorder %s37, 7
        %s710 = scalar_select %p709, %s37, 7
        %s711 = smul.addr %s710, 4
        %s712 = smul.addr %s711, 8
        %s713 = scalar_lea.vmem %s1, %s712
        %p714 = scmp.lt.s32.totalorder %s37, 7
        %s715 = scalar_select %p714, %s37, 7
        %s716 = smul.addr %s715, 4
        %s717 = smul.addr %s716, 8
        %s718 = scalar_lea.vmem %s3, %s717
        %p719 = scmp.lt.s32.totalorder %s37, 7
        %s720 = scalar_select %p719, %s37, 7
        %s721 = scalar_lea.vmem %s5, %s720
        %p722 = scmp.lt.s32.totalorder %s37, 7
        %s723 = scalar_select %p722, %s37, 7
        %s724 = smul.addr %s723, 4
        %s725 = smul.addr %s724, 8
        %s726 = scalar_lea.vmem %s7, %s725
        %p727 = scmp.lt.s32.totalorder %s37, 7
        %s728 = scalar_select %p727, %s37, 7
        %s729 = smul.addr %s728, 8
        %s730 = smul.addr %s729, 8
        %s731 = scalar_lea.vmem %s9, %s730
        %p732 = scmp.lt.s32.totalorder %s37, 7
        %s733 = scalar_select %p732, %s37, 7
        %s734 = scalar_lea.vmem %s10, %s733
        %p735 = scmp.eq.s32.totalorder %s37, 0
        // Predicated region
        $region101: #{bert_layers.1} parent=71 // pred_check
          %p736 = pneg %p735
        $region102: #{bert_layers.1} parent=71 // pred_check_branch
          %738 = sbr.rel (%p736) target = $region104
        $region103: #{bert_layers.1} parent=71 // pred_region
          %v739 = vld [vmem:[#allocation3] sm:$0xff]
          %vm740 = vcmask 261120
          %741 = vst.msk [vmem:[#allocation2] sm:$0xff] %vm740, %v739
        $region104: #{bert_layers.1} parent=71 // pred_fallthru
          _
        %v742 = vld [vmem:[#allocation2] sm:$0xff]
        %v743 = vld [vmem:[%s713] sm:$0xff]
        %v744 = vld [vmem:[%s713 + $0x8] sm:$0xff]
        %v745 = vld [vmem:[%s713 + $0x10] sm:$0xff]
        %v746 = vld [vmem:[%s713 + $0x18] sm:$0xff]
        %v747 = vld [vmem:[%s581] sm:$0x1]
        %v749 = vlaneseq
        %v750 = vshrl.u32 %v749, 7
        %v751 = vsub.s32 0, %v750
        %v752 = vrot.slane %v747, %v751
        %vm754 = vcmask 261120
        %v756 = vsel %vm754, %v742, 0
        %758 = vmatprep.subr.mxu0 0.0
        %759 = vmatpush1.msra.mxu0 0.0
        %760 = vmatprep.subr.mxu0 0.0
        %761 = vmatpush1.msra.mxu0 0.0
        %762 = vmatprep.subr.mxu0 0.0
        %763 = vmatpush1.msra.mxu0 0.0
        %764 = vmatprep.subr.mxu0 0.0
        %765 = vmatpush1.msra.mxu0 0.0
        %766 = vmatprep.subr.mxu0 0.0
        %767 = vmatpush1.msra.mxu0 0.0
        %768 = vmatprep.subr.mxu0 0.0
        %769 = vmatpush1.msra.mxu0 0.0
        %770 = vmatprep.subr.mxu0 0.0
        %771 = vmatpush1.msra.mxu0 0.0
        %772 = vmatprep.subr.mxu0 0.0
        %773 = vmatpush1.msra.mxu0 0.0
        %774 = vmatprep.subr.mxu0 0.0
        %775 = vmatpush1.msra.mxu0 0.0
        %776 = vmatprep.subr.mxu0 0.0
        %777 = vmatpush1.msra.mxu0 0.0
        %778 = vmatprep.subr.mxu0 0.0
        %779 = vmatpush1.msra.mxu0 0.0
        %780 = vmatprep.subr.mxu0 0.0
        %781 = vmatpush1.msra.mxu0 0.0
        %782 = vmatprep.subr.mxu0 0.0
        %783 = vmatpush1.msra.mxu0 %v746
        %784 = vmatprep.subr.mxu0 0.0
        %785 = vmatpush1.msra.mxu0 %v745
        %786 = vmatprep.subr.mxu0 0.0
        %787 = vmatpush1.msra.mxu0 %v744
        %788 = vmatprep.subr.mxu0 0.0
        %789 = vmatpush1.msra.mxu0 %v743
        %790 = vmatprep.subr.mxu0 0.0
        %791 = vmatpush2.msra.mxu0 0.0
        %792 = vmatprep.subr.mxu0 0.0
        %793 = vmatpush2.msra.mxu0 0.0
        %794 = vmatprep.subr.mxu0 0.0
        %795 = vmatpush2.msra.mxu0 0.0
        %796 = vmatprep.subr.mxu0 0.0
        %797 = vmatpush2.msra.mxu0 0.0
        %798 = vmatprep.subr.mxu0 0.0
        %799 = vmatpush2.msra.mxu0 0.0
        %800 = vmatprep.subr.mxu0 0.0
        %801 = vmatpush2.msra.mxu0 0.0
        %802 = vmatprep.subr.mxu0 0.0
        %803 = vmatpush2.msra.mxu0 0.0
        %804 = vmatprep.subr.mxu0 0.0
        %805 = vmatpush2.msra.mxu0 0.0
        %806 = vmatprep.subr.mxu0 0.0
        %807 = vmatpush2.msra.mxu0 0.0
        %808 = vmatprep.subr.mxu0 0.0
        %809 = vmatpush2.msra.mxu0 0.0
        %810 = vmatprep.subr.mxu0 0.0
        %811 = vmatpush2.msra.mxu0 0.0
        %812 = vmatprep.subr.mxu0 0.0
        %813 = vmatpush2.msra.mxu0 0.0
        %814 = vmatprep.subr.mxu0 0.0
        %815 = vmatpush2.msra.mxu0 0.0
        %816 = vmatprep.subr.mxu0 0.0
        %817 = vmatpush2.msra.mxu0 0.0
        %818 = vmatprep.subr.mxu0 0.0
        %819 = vmatpush2.msra.mxu0 0.0
        %820 = vmatprep.subr.mxu0 0.0
        %821 = vmatpush2.msra.mxu0 0.0
        %822 = vmatprep.mubr.f32.mxu0 0.0
        %823 = vmatmul.mubr.f32.gmra.mxu0 %v756
        %v824 = vpop.f32.mrf.mxu0
        %v825 = vadd.f32 %v752, %v824
        %v826 = vpop.f32.mrf.mxu0
        %827 = vdwg.mxu0
        %v828 = vmul.f32 %v825, 0.35355338
        %830 = vrot.lane.b32.xlu0 %v825, 96
        %v831 = vpop.permute.xlu0 %830
        %vm832 = vcmask 64512
        %v834 = vsel %vm832, %v828, 0
        %v836 = vsel %vm832, %v831, 0
        %838 = vmatprep.subr.mxu0 0.0
        %839 = vmatpush1.xpose.msra.mxu0 0.0
        %840 = vmatprep.subr.mxu0 0.0
        %841 = vmatpush1.xpose.msra.mxu0 0.0
        %842 = vmatprep.subr.mxu0 0.0
        %843 = vmatpush1.xpose.msra.mxu0 0.0
        %844 = vmatprep.subr.mxu0 0.0
        %845 = vmatpush1.xpose.msra.mxu0 0.0
        %846 = vmatprep.subr.mxu0 0.0
        %847 = vmatpush1.xpose.msra.mxu0 0.0
        %848 = vmatprep.subr.mxu0 0.0
        %849 = vmatpush1.xpose.msra.mxu0 0.0
        %850 = vmatprep.subr.mxu0 0.0
        %851 = vmatpush1.xpose.msra.mxu0 0.0
        %852 = vmatprep.subr.mxu0 0.0
        %853 = vmatpush1.xpose.msra.mxu0 0.0
        %854 = vmatprep.subr.mxu0 0.0
        %855 = vmatpush1.xpose.msra.mxu0 0.0
        %856 = vmatprep.subr.mxu0 0.0
        %857 = vmatpush1.xpose.msra.mxu0 0.0
        %858 = vmatprep.subr.mxu0 0.0
        %859 = vmatpush1.xpose.msra.mxu0 0.0
        %860 = vmatprep.subr.mxu0 0.0
        %861 = vmatpush1.xpose.msra.mxu0 0.0
        %862 = vmatprep.subr.mxu0 0.0
        %863 = vmatpush1.xpose.msra.mxu0 0.0
        %864 = vmatprep.subr.mxu0 0.0
        %865 = vmatpush1.xpose.msra.mxu0 0.0
        %866 = vmatprep.subr.mxu0 0.0
        %867 = vmatpush1.xpose.msra.mxu0 0.0
        %868 = vmatprep.subr.mxu0 0.0
        %869 = vmatpush1.xpose.msra.mxu0 %v836
        %870 = vmatprep.subr.mxu0 0.0
        %871 = vmatpush2.xpose.msra.mxu0 0.0
        %872 = vmatprep.subr.mxu0 0.0
        %873 = vmatpush2.xpose.msra.mxu0 0.0
        %874 = vmatprep.subr.mxu0 0.0
        %875 = vmatpush2.xpose.msra.mxu0 0.0
        %876 = vmatprep.subr.mxu0 0.0
        %877 = vmatpush2.xpose.msra.mxu0 0.0
        %878 = vmatprep.subr.mxu0 0.0
        %879 = vmatpush2.xpose.msra.mxu0 0.0
        %880 = vmatprep.subr.mxu0 0.0
        %881 = vmatpush2.xpose.msra.mxu0 0.0
        %882 = vmatprep.subr.mxu0 0.0
        %883 = vmatpush2.xpose.msra.mxu0 0.0
        %884 = vmatprep.subr.mxu0 0.0
        %885 = vmatpush2.xpose.msra.mxu0 0.0
        %886 = vmatprep.subr.mxu0 0.0
        %887 = vmatpush2.xpose.msra.mxu0 0.0
        %888 = vmatprep.subr.mxu0 0.0
        %889 = vmatpush2.xpose.msra.mxu0 0.0
        %890 = vmatprep.subr.mxu0 0.0
        %891 = vmatpush2.xpose.msra.mxu0 0.0
        %892 = vmatprep.subr.mxu0 0.0
        %893 = vmatpush2.xpose.msra.mxu0 0.0
        %894 = vmatprep.subr.mxu0 0.0
        %895 = vmatpush2.xpose.msra.mxu0 0.0
        %896 = vmatprep.subr.mxu0 0.0
        %897 = vmatpush2.xpose.msra.mxu0 0.0
        %898 = vmatprep.subr.mxu0 0.0
        %899 = vmatpush2.xpose.msra.mxu0 0.0
        %900 = vmatprep.subr.mxu0 0.0
        %901 = vmatpush2.xpose.msra.mxu0 0.0
        %902 = vmatprep.mubr.f32.mxu0 0.0
        %903 = vmatmul.mubr.f32.gmra.mxu0 %v834
        %v904 = vpop.f32.mrf.mxu0
        %v905 = vadd.f32 0.0, %v904
        %v906 = vpop.f32.mrf.mxu0
        %907 = vdwg.mxu0
        %v908 = vsel %vm832, %v905, -inf
        %909 = vmax.xlane.f32.xlu0 %v908
        %v910 = vpop.xlane.xlu0 %909
        %v911 = vsub.f32 %v905, %v910
        %v912 = vmul.f32 %v911, 1.442695
        %v913 = vpow.pop %v912
        %v914 = vsel %vm832, %v913, 0.0
        %915 = vadd.xlane.f32.xlu0 %v914
        %v916 = vpop.xlane.xlu0 %915
        %v917 = vrcp.pop %v916
        %v918 = vmul.f32 %v913, %v917
        %919 = vrot.lane.b32.xlu0 %v825, 64
        %v920 = vpop.permute.xlu0 %919
        %v923 = vsel %vm832, %v918, 0
        %925 = vmatprep.subr.mxu0 0.0
        %926 = vmatpush1.msra.mxu0 0.0
        %927 = vmatprep.subr.mxu0 0.0
        %928 = vmatpush1.msra.mxu0 0.0
        %929 = vmatprep.subr.mxu0 0.0
        %930 = vmatpush1.msra.mxu0 0.0
        %931 = vmatprep.subr.mxu0 0.0
        %932 = vmatpush1.msra.mxu0 0.0
        %933 = vmatprep.subr.mxu0 0.0
        %934 = vmatpush1.msra.mxu0 0.0
        %935 = vmatprep.subr.mxu0 0.0
        %936 = vmatpush1.msra.mxu0 0.0
        %937 = vmatprep.subr.mxu0 0.0
        %938 = vmatpush1.msra.mxu0 0.0
        %939 = vmatprep.subr.mxu0 0.0
        %940 = vmatpush1.msra.mxu0 0.0
        %941 = vmatprep.subr.mxu0 0.0
        %942 = vmatpush1.msra.mxu0 0.0
        %943 = vmatprep.subr.mxu0 0.0
        %944 = vmatpush1.msra.mxu0 0.0
        %945 = vmatprep.subr.mxu0 0.0
        %946 = vmatpush1.msra.mxu0 0.0
        %947 = vmatprep.subr.mxu0 0.0
        %948 = vmatpush1.msra.mxu0 0.0
        %949 = vmatprep.subr.mxu0 0.0
        %950 = vmatpush1.msra.mxu0 0.0
        %951 = vmatprep.subr.mxu0 0.0
        %952 = vmatpush1.msra.mxu0 0.0
        %953 = vmatprep.subr.mxu0 0.0
        %954 = vmatpush1.msra.mxu0 0.0
        %955 = vmatprep.subr.mxu0 0.0
        %956 = vmatpush1.msra.mxu0 %v920
        %957 = vmatprep.subr.mxu0 0.0
        %958 = vmatpush2.msra.mxu0 0.0
        %959 = vmatprep.subr.mxu0 0.0
        %960 = vmatpush2.msra.mxu0 0.0
        %961 = vmatprep.subr.mxu0 0.0
        %962 = vmatpush2.msra.mxu0 0.0
        %963 = vmatprep.subr.mxu0 0.0
        %964 = vmatpush2.msra.mxu0 0.0
        %965 = vmatprep.subr.mxu0 0.0
        %966 = vmatpush2.msra.mxu0 0.0
        %967 = vmatprep.subr.mxu0 0.0
        %968 = vmatpush2.msra.mxu0 0.0
        %969 = vmatprep.subr.mxu0 0.0
        %970 = vmatpush2.msra.mxu0 0.0
        %971 = vmatprep.subr.mxu0 0.0
        %972 = vmatpush2.msra.mxu0 0.0
        %973 = vmatprep.subr.mxu0 0.0
        %974 = vmatpush2.msra.mxu0 0.0
        %975 = vmatprep.subr.mxu0 0.0
        %976 = vmatpush2.msra.mxu0 0.0
        %977 = vmatprep.subr.mxu0 0.0
        %978 = vmatpush2.msra.mxu0 0.0
        %979 = vmatprep.subr.mxu0 0.0
        %980 = vmatpush2.msra.mxu0 0.0
        %981 = vmatprep.subr.mxu0 0.0
        %982 = vmatpush2.msra.mxu0 0.0
        %983 = vmatprep.subr.mxu0 0.0
        %984 = vmatpush2.msra.mxu0 0.0
        %985 = vmatprep.subr.mxu0 0.0
        %986 = vmatpush2.msra.mxu0 0.0
        %987 = vmatprep.subr.mxu0 0.0
        %988 = vmatpush2.msra.mxu0 0.0
        %989 = vmatprep.mubr.f32.mxu0 0.0
        %990 = vmatmul.mubr.f32.gmra.mxu0 %v923
        %v991 = vpop.f32.mrf.mxu0
        %v992 = vadd.f32 0.0, %v991
        %v993 = vpop.f32.mrf.mxu0
        %994 = vdwg.mxu0
        %995 = vrot.lane.b32.xlu0 %v828, 120
        %v996 = vpop.permute.xlu0 %995
        %997 = vrot.lane.b32.xlu0 %v825, 88
        %v998 = vpop.permute.xlu0 %997
        %v999 = vsel %vm832, %v996, 0
        %v1001 = vsel %vm832, %v998, 0
        %1003 = vmatprep.subr.mxu0 0.0
        %1004 = vmatpush1.xpose.msra.mxu0 0.0
        %1005 = vmatprep.subr.mxu0 0.0
        %1006 = vmatpush1.xpose.msra.mxu0 0.0
        %1007 = vmatprep.subr.mxu0 0.0
        %1008 = vmatpush1.xpose.msra.mxu0 0.0
        %1009 = vmatprep.subr.mxu0 0.0
        %1010 = vmatpush1.xpose.msra.mxu0 0.0
        %1011 = vmatprep.subr.mxu0 0.0
        %1012 = vmatpush1.xpose.msra.mxu0 0.0
        %1013 = vmatprep.subr.mxu0 0.0
        %1014 = vmatpush1.xpose.msra.mxu0 0.0
        %1015 = vmatprep.subr.mxu0 0.0
        %1016 = vmatpush1.xpose.msra.mxu0 0.0
        %1017 = vmatprep.subr.mxu0 0.0
        %1018 = vmatpush1.xpose.msra.mxu0 0.0
        %1019 = vmatprep.subr.mxu0 0.0
        %1020 = vmatpush1.xpose.msra.mxu0 0.0
        %1021 = vmatprep.subr.mxu0 0.0
        %1022 = vmatpush1.xpose.msra.mxu0 0.0
        %1023 = vmatprep.subr.mxu0 0.0
        %1024 = vmatpush1.xpose.msra.mxu0 0.0
        %1025 = vmatprep.subr.mxu0 0.0
        %1026 = vmatpush1.xpose.msra.mxu0 0.0
        %1027 = vmatprep.subr.mxu0 0.0
        %1028 = vmatpush1.xpose.msra.mxu0 0.0
        %1029 = vmatprep.subr.mxu0 0.0
        %1030 = vmatpush1.xpose.msra.mxu0 0.0
        %1031 = vmatprep.subr.mxu0 0.0
        %1032 = vmatpush1.xpose.msra.mxu0 0.0
        %1033 = vmatprep.subr.mxu0 0.0
        %1034 = vmatpush1.xpose.msra.mxu0 %v1001
        %1035 = vmatprep.subr.mxu0 0.0
        %1036 = vmatpush2.xpose.msra.mxu0 0.0
        %1037 = vmatprep.subr.mxu0 0.0
        %1038 = vmatpush2.xpose.msra.mxu0 0.0
        %1039 = vmatprep.subr.mxu0 0.0
        %1040 = vmatpush2.xpose.msra.mxu0 0.0
        %1041 = vmatprep.subr.mxu0 0.0
        %1042 = vmatpush2.xpose.msra.mxu0 0.0
        %1043 = vmatprep.subr.mxu0 0.0
        %1044 = vmatpush2.xpose.msra.mxu0 0.0
        %1045 = vmatprep.subr.mxu0 0.0
        %1046 = vmatpush2.xpose.msra.mxu0 0.0
        %1047 = vmatprep.subr.mxu0 0.0
        %1048 = vmatpush2.xpose.msra.mxu0 0.0
        %1049 = vmatprep.subr.mxu0 0.0
        %1050 = vmatpush2.xpose.msra.mxu0 0.0
        %1051 = vmatprep.subr.mxu0 0.0
        %1052 = vmatpush2.xpose.msra.mxu0 0.0
        %1053 = vmatprep.subr.mxu0 0.0
        %1054 = vmatpush2.xpose.msra.mxu0 0.0
        %1055 = vmatprep.subr.mxu0 0.0
        %1056 = vmatpush2.xpose.msra.mxu0 0.0
        %1057 = vmatprep.subr.mxu0 0.0
        %1058 = vmatpush2.xpose.msra.mxu0 0.0
        %1059 = vmatprep.subr.mxu0 0.0
        %1060 = vmatpush2.xpose.msra.mxu0 0.0
        %1061 = vmatprep.subr.mxu0 0.0
        %1062 = vmatpush2.xpose.msra.mxu0 0.0
        %1063 = vmatprep.subr.mxu0 0.0
        %1064 = vmatpush2.xpose.msra.mxu0 0.0
        %1065 = vmatprep.subr.mxu0 0.0
        %1066 = vmatpush2.xpose.msra.mxu0 0.0
        %1067 = vmatprep.mubr.f32.mxu0 0.0
        %1068 = vmatmul.mubr.f32.gmra.mxu0 %v999
        %v1069 = vpop.f32.mrf.mxu0
        %v1070 = vadd.f32 0.0, %v1069
        %v1071 = vpop.f32.mrf.mxu0
        %1072 = vdwg.mxu0
        %v1073 = vsel %vm832, %v1070, -inf
        %1074 = vmax.xlane.f32.xlu0 %v1073
        %v1075 = vpop.xlane.xlu0 %1074
        %v1076 = vsub.f32 %v1070, %v1075
        %v1077 = vmul.f32 %v1076, 1.442695
        %v1078 = vpow.pop %v1077
        %v1079 = vsel %vm832, %v1078, 0.0
        %1080 = vadd.xlane.f32.xlu0 %v1079
        %v1081 = vpop.xlane.xlu0 %1080
        %v1082 = vrcp.pop %v1081
        %v1083 = vmul.f32 %v1078, %v1082
        %1084 = vrot.lane.b32.xlu0 %v825, 56
        %v1085 = vpop.permute.xlu0 %1084
        %v1088 = vsel %vm832, %v1083, 0
        %1090 = vmatprep.subr.mxu0 0.0
        %1091 = vmatpush1.msra.mxu0 0.0
        %1092 = vmatprep.subr.mxu0 0.0
        %1093 = vmatpush1.msra.mxu0 0.0
        %1094 = vmatprep.subr.mxu0 0.0
        %1095 = vmatpush1.msra.mxu0 0.0
        %1096 = vmatprep.subr.mxu0 0.0
        %1097 = vmatpush1.msra.mxu0 0.0
        %1098 = vmatprep.subr.mxu0 0.0
        %1099 = vmatpush1.msra.mxu0 0.0
        %1100 = vmatprep.subr.mxu0 0.0
        %1101 = vmatpush1.msra.mxu0 0.0
        %1102 = vmatprep.subr.mxu0 0.0
        %1103 = vmatpush1.msra.mxu0 0.0
        %1104 = vmatprep.subr.mxu0 0.0
        %1105 = vmatpush1.msra.mxu0 0.0
        %1106 = vmatprep.subr.mxu0 0.0
        %1107 = vmatpush1.msra.mxu0 0.0
        %1108 = vmatprep.subr.mxu0 0.0
        %1109 = vmatpush1.msra.mxu0 0.0
        %1110 = vmatprep.subr.mxu0 0.0
        %1111 = vmatpush1.msra.mxu0 0.0
        %1112 = vmatprep.subr.mxu0 0.0
        %1113 = vmatpush1.msra.mxu0 0.0
        %1114 = vmatprep.subr.mxu0 0.0
        %1115 = vmatpush1.msra.mxu0 0.0
        %1116 = vmatprep.subr.mxu0 0.0
        %1117 = vmatpush1.msra.mxu0 0.0
        %1118 = vmatprep.subr.mxu0 0.0
        %1119 = vmatpush1.msra.mxu0 0.0
        %1120 = vmatprep.subr.mxu0 0.0
        %1121 = vmatpush1.msra.mxu0 %v1085
        %1122 = vmatprep.subr.mxu0 0.0
        %1123 = vmatpush2.msra.mxu0 0.0
        %1124 = vmatprep.subr.mxu0 0.0
        %1125 = vmatpush2.msra.mxu0 0.0
        %1126 = vmatprep.subr.mxu0 0.0
        %1127 = vmatpush2.msra.mxu0 0.0
        %1128 = vmatprep.subr.mxu0 0.0
        %1129 = vmatpush2.msra.mxu0 0.0
        %1130 = vmatprep.subr.mxu0 0.0
        %1131 = vmatpush2.msra.mxu0 0.0
        %1132 = vmatprep.subr.mxu0 0.0
        %1133 = vmatpush2.msra.mxu0 0.0
        %1134 = vmatprep.subr.mxu0 0.0
        %1135 = vmatpush2.msra.mxu0 0.0
        %1136 = vmatprep.subr.mxu0 0.0
        %1137 = vmatpush2.msra.mxu0 0.0
        %1138 = vmatprep.subr.mxu0 0.0
        %1139 = vmatpush2.msra.mxu0 0.0
        %1140 = vmatprep.subr.mxu0 0.0
        %1141 = vmatpush2.msra.mxu0 0.0
        %1142 = vmatprep.subr.mxu0 0.0
        %1143 = vmatpush2.msra.mxu0 0.0
        %1144 = vmatprep.subr.mxu0 0.0
        %1145 = vmatpush2.msra.mxu0 0.0
        %1146 = vmatprep.subr.mxu0 0.0
        %1147 = vmatpush2.msra.mxu0 0.0
        %1148 = vmatprep.subr.mxu0 0.0
        %1149 = vmatpush2.msra.mxu0 0.0
        %1150 = vmatprep.subr.mxu0 0.0
        %1151 = vmatpush2.msra.mxu0 0.0
        %1152 = vmatprep.subr.mxu0 0.0
        %1153 = vmatpush2.msra.mxu0 0.0
        %1154 = vmatprep.mubr.f32.mxu0 0.0
        %1155 = vmatmul.mubr.f32.gmra.mxu0 %v1088
        %v1156 = vpop.f32.mrf.mxu0
        %v1157 = vadd.f32 0.0, %v1156
        %v1158 = vpop.f32.mrf.mxu0
        %1159 = vdwg.mxu0
        %1160 = vrot.lane.b32.xlu0 %v828, 112
        %v1161 = vpop.permute.xlu0 %1160
        %1162 = vrot.lane.b32.xlu0 %v825, 80
        %v1163 = vpop.permute.xlu0 %1162
        %v1164 = vsel %vm832, %v1161, 0
        %v1166 = vsel %vm832, %v1163, 0
        %1168 = vmatprep.subr.mxu0 0.0
        %1169 = vmatpush1.xpose.msra.mxu0 0.0
        %1170 = vmatprep.subr.mxu0 0.0
        %1171 = vmatpush1.xpose.msra.mxu0 0.0
        %1172 = vmatprep.subr.mxu0 0.0
        %1173 = vmatpush1.xpose.msra.mxu0 0.0
        %1174 = vmatprep.subr.mxu0 0.0
        %1175 = vmatpush1.xpose.msra.mxu0 0.0
        %1176 = vmatprep.subr.mxu0 0.0
        %1177 = vmatpush1.xpose.msra.mxu0 0.0
        %1178 = vmatprep.subr.mxu0 0.0
        %1179 = vmatpush1.xpose.msra.mxu0 0.0
        %1180 = vmatprep.subr.mxu0 0.0
        %1181 = vmatpush1.xpose.msra.mxu0 0.0
        %1182 = vmatprep.subr.mxu0 0.0
        %1183 = vmatpush1.xpose.msra.mxu0 0.0
        %1184 = vmatprep.subr.mxu0 0.0
        %1185 = vmatpush1.xpose.msra.mxu0 0.0
        %1186 = vmatprep.subr.mxu0 0.0
        %1187 = vmatpush1.xpose.msra.mxu0 0.0
        %1188 = vmatprep.subr.mxu0 0.0
        %1189 = vmatpush1.xpose.msra.mxu0 0.0
        %1190 = vmatprep.subr.mxu0 0.0
        %1191 = vmatpush1.xpose.msra.mxu0 0.0
        %1192 = vmatprep.subr.mxu0 0.0
        %1193 = vmatpush1.xpose.msra.mxu0 0.0
        %1194 = vmatprep.subr.mxu0 0.0
        %1195 = vmatpush1.xpose.msra.mxu0 0.0
        %1196 = vmatprep.subr.mxu0 0.0
        %1197 = vmatpush1.xpose.msra.mxu0 0.0
        %1198 = vmatprep.subr.mxu0 0.0
        %1199 = vmatpush1.xpose.msra.mxu0 %v1166
        %1200 = vmatprep.subr.mxu0 0.0
        %1201 = vmatpush2.xpose.msra.mxu0 0.0
        %1202 = vmatprep.subr.mxu0 0.0
        %1203 = vmatpush2.xpose.msra.mxu0 0.0
        %1204 = vmatprep.subr.mxu0 0.0
        %1205 = vmatpush2.xpose.msra.mxu0 0.0
        %1206 = vmatprep.subr.mxu0 0.0
        %1207 = vmatpush2.xpose.msra.mxu0 0.0
        %1208 = vmatprep.subr.mxu0 0.0
        %1209 = vmatpush2.xpose.msra.mxu0 0.0
        %1210 = vmatprep.subr.mxu0 0.0
        %1211 = vmatpush2.xpose.msra.mxu0 0.0
        %1212 = vmatprep.subr.mxu0 0.0
        %1213 = vmatpush2.xpose.msra.mxu0 0.0
        %1214 = vmatprep.subr.mxu0 0.0
        %1215 = vmatpush2.xpose.msra.mxu0 0.0
        %1216 = vmatprep.subr.mxu0 0.0
        %1217 = vmatpush2.xpose.msra.mxu0 0.0
        %1218 = vmatprep.subr.mxu0 0.0
        %1219 = vmatpush2.xpose.msra.mxu0 0.0
        %1220 = vmatprep.subr.mxu0 0.0
        %1221 = vmatpush2.xpose.msra.mxu0 0.0
        %1222 = vmatprep.subr.mxu0 0.0
        %1223 = vmatpush2.xpose.msra.mxu0 0.0
        %1224 = vmatprep.subr.mxu0 0.0
        %1225 = vmatpush2.xpose.msra.mxu0 0.0
        %1226 = vmatprep.subr.mxu0 0.0
        %1227 = vmatpush2.xpose.msra.mxu0 0.0
        %1228 = vmatprep.subr.mxu0 0.0
        %1229 = vmatpush2.xpose.msra.mxu0 0.0
        %1230 = vmatprep.subr.mxu0 0.0
        %1231 = vmatpush2.xpose.msra.mxu0 0.0
        %1232 = vmatprep.mubr.f32.mxu0 0.0
        %1233 = vmatmul.mubr.f32.gmra.mxu0 %v1164
        %v1234 = vpop.f32.mrf.mxu0
        %v1235 = vadd.f32 0.0, %v1234
        %v1236 = vpop.f32.mrf.mxu0
        %1237 = vdwg.mxu0
        %v1238 = vsel %vm832, %v1235, -inf
        %1239 = vmax.xlane.f32.xlu0 %v1238
        %v1240 = vpop.xlane.xlu0 %1239
        %v1241 = vsub.f32 %v1235, %v1240
        %v1242 = vmul.f32 %v1241, 1.442695
        %v1243 = vpow.pop %v1242
        %v1244 = vsel %vm832, %v1243, 0.0
        %1245 = vadd.xlane.f32.xlu0 %v1244
        %v1246 = vpop.xlane.xlu0 %1245
        %v1247 = vrcp.pop %v1246
        %v1248 = vmul.f32 %v1243, %v1247
        %1249 = vrot.lane.b32.xlu0 %v825, 48
        %v1250 = vpop.permute.xlu0 %1249
        %v1253 = vsel %vm832, %v1248, 0
        %1255 = vmatprep.subr.mxu0 0.0
        %1256 = vmatpush1.msra.mxu0 0.0
        %1257 = vmatprep.subr.mxu0 0.0
        %1258 = vmatpush1.msra.mxu0 0.0
        %1259 = vmatprep.subr.mxu0 0.0
        %1260 = vmatpush1.msra.mxu0 0.0
        %1261 = vmatprep.subr.mxu0 0.0
        %1262 = vmatpush1.msra.mxu0 0.0
        %1263 = vmatprep.subr.mxu0 0.0
        %1264 = vmatpush1.msra.mxu0 0.0
        %1265 = vmatprep.subr.mxu0 0.0
        %1266 = vmatpush1.msra.mxu0 0.0
        %1267 = vmatprep.subr.mxu0 0.0
        %1268 = vmatpush1.msra.mxu0 0.0
        %1269 = vmatprep.subr.mxu0 0.0
        %1270 = vmatpush1.msra.mxu0 0.0
        %1271 = vmatprep.subr.mxu0 0.0
        %1272 = vmatpush1.msra.mxu0 0.0
        %1273 = vmatprep.subr.mxu0 0.0
        %1274 = vmatpush1.msra.mxu0 0.0
        %1275 = vmatprep.subr.mxu0 0.0
        %1276 = vmatpush1.msra.mxu0 0.0
        %1277 = vmatprep.subr.mxu0 0.0
        %1278 = vmatpush1.msra.mxu0 0.0
        %1279 = vmatprep.subr.mxu0 0.0
        %1280 = vmatpush1.msra.mxu0 0.0
        %1281 = vmatprep.subr.mxu0 0.0
        %1282 = vmatpush1.msra.mxu0 0.0
        %1283 = vmatprep.subr.mxu0 0.0
        %1284 = vmatpush1.msra.mxu0 0.0
        %1285 = vmatprep.subr.mxu0 0.0
        %1286 = vmatpush1.msra.mxu0 %v1250
        %1287 = vmatprep.subr.mxu0 0.0
        %1288 = vmatpush2.msra.mxu0 0.0
        %1289 = vmatprep.subr.mxu0 0.0
        %1290 = vmatpush2.msra.mxu0 0.0
        %1291 = vmatprep.subr.mxu0 0.0
        %1292 = vmatpush2.msra.mxu0 0.0
        %1293 = vmatprep.subr.mxu0 0.0
        %1294 = vmatpush2.msra.mxu0 0.0
        %1295 = vmatprep.subr.mxu0 0.0
        %1296 = vmatpush2.msra.mxu0 0.0
        %1297 = vmatprep.subr.mxu0 0.0
        %1298 = vmatpush2.msra.mxu0 0.0
        %1299 = vmatprep.subr.mxu0 0.0
        %1300 = vmatpush2.msra.mxu0 0.0
        %1301 = vmatprep.subr.mxu0 0.0
        %1302 = vmatpush2.msra.mxu0 0.0
        %1303 = vmatprep.subr.mxu0 0.0
        %1304 = vmatpush2.msra.mxu0 0.0
        %1305 = vmatprep.subr.mxu0 0.0
        %1306 = vmatpush2.msra.mxu0 0.0
        %1307 = vmatprep.subr.mxu0 0.0
        %1308 = vmatpush2.msra.mxu0 0.0
        %1309 = vmatprep.subr.mxu0 0.0
        %1310 = vmatpush2.msra.mxu0 0.0
        %1311 = vmatprep.subr.mxu0 0.0
        %1312 = vmatpush2.msra.mxu0 0.0
        %1313 = vmatprep.subr.mxu0 0.0
        %1314 = vmatpush2.msra.mxu0 0.0
        %1315 = vmatprep.subr.mxu0 0.0
        %1316 = vmatpush2.msra.mxu0 0.0
        %1317 = vmatprep.subr.mxu0 0.0
        %1318 = vmatpush2.msra.mxu0 0.0
        %1319 = vmatprep.mubr.f32.mxu0 0.0
        %1320 = vmatmul.mubr.f32.gmra.mxu0 %v1253
        %v1321 = vpop.f32.mrf.mxu0
        %v1322 = vadd.f32 0.0, %v1321
        %v1323 = vpop.f32.mrf.mxu0
        %1324 = vdwg.mxu0
        %1325 = vrot.lane.b32.xlu0 %v828, 104
        %v1326 = vpop.permute.xlu0 %1325
        %1327 = vrot.lane.b32.xlu0 %v825, 72
        %v1328 = vpop.permute.xlu0 %1327
        %v1329 = vsel %vm832, %v1326, 0
        %v1331 = vsel %vm832, %v1328, 0
        %1333 = vmatprep.subr.mxu0 0.0
        %1334 = vmatpush1.xpose.msra.mxu0 0.0
        %1335 = vmatprep.subr.mxu0 0.0
        %1336 = vmatpush1.xpose.msra.mxu0 0.0
        %1337 = vmatprep.subr.mxu0 0.0
        %1338 = vmatpush1.xpose.msra.mxu0 0.0
        %1339 = vmatprep.subr.mxu0 0.0
        %1340 = vmatpush1.xpose.msra.mxu0 0.0
        %1341 = vmatprep.subr.mxu0 0.0
        %1342 = vmatpush1.xpose.msra.mxu0 0.0
        %1343 = vmatprep.subr.mxu0 0.0
        %1344 = vmatpush1.xpose.msra.mxu0 0.0
        %1345 = vmatprep.subr.mxu0 0.0
        %1346 = vmatpush1.xpose.msra.mxu0 0.0
        %1347 = vmatprep.subr.mxu0 0.0
        %1348 = vmatpush1.xpose.msra.mxu0 0.0
        %1349 = vmatprep.subr.mxu0 0.0
        %1350 = vmatpush1.xpose.msra.mxu0 0.0
        %1351 = vmatprep.subr.mxu0 0.0
        %1352 = vmatpush1.xpose.msra.mxu0 0.0
        %1353 = vmatprep.subr.mxu0 0.0
        %1354 = vmatpush1.xpose.msra.mxu0 0.0
        %1355 = vmatprep.subr.mxu0 0.0
        %1356 = vmatpush1.xpose.msra.mxu0 0.0
        %1357 = vmatprep.subr.mxu0 0.0
        %1358 = vmatpush1.xpose.msra.mxu0 0.0
        %1359 = vmatprep.subr.mxu0 0.0
        %1360 = vmatpush1.xpose.msra.mxu0 0.0
        %1361 = vmatprep.subr.mxu0 0.0
        %1362 = vmatpush1.xpose.msra.mxu0 0.0
        %1363 = vmatprep.subr.mxu0 0.0
        %1364 = vmatpush1.xpose.msra.mxu0 %v1331
        %1365 = vmatprep.subr.mxu0 0.0
        %1366 = vmatpush2.xpose.msra.mxu0 0.0
        %1367 = vmatprep.subr.mxu0 0.0
        %1368 = vmatpush2.xpose.msra.mxu0 0.0
        %1369 = vmatprep.subr.mxu0 0.0
        %1370 = vmatpush2.xpose.msra.mxu0 0.0
        %1371 = vmatprep.subr.mxu0 0.0
        %1372 = vmatpush2.xpose.msra.mxu0 0.0
        %1373 = vmatprep.subr.mxu0 0.0
        %1374 = vmatpush2.xpose.msra.mxu0 0.0
        %1375 = vmatprep.subr.mxu0 0.0
        %1376 = vmatpush2.xpose.msra.mxu0 0.0
        %1377 = vmatprep.subr.mxu0 0.0
        %1378 = vmatpush2.xpose.msra.mxu0 0.0
        %1379 = vmatprep.subr.mxu0 0.0
        %1380 = vmatpush2.xpose.msra.mxu0 0.0
        %1381 = vmatprep.subr.mxu0 0.0
        %1382 = vmatpush2.xpose.msra.mxu0 0.0
        %1383 = vmatprep.subr.mxu0 0.0
        %1384 = vmatpush2.xpose.msra.mxu0 0.0
        %1385 = vmatprep.subr.mxu0 0.0
        %1386 = vmatpush2.xpose.msra.mxu0 0.0
        %1387 = vmatprep.subr.mxu0 0.0
        %1388 = vmatpush2.xpose.msra.mxu0 0.0
        %1389 = vmatprep.subr.mxu0 0.0
        %1390 = vmatpush2.xpose.msra.mxu0 0.0
        %1391 = vmatprep.subr.mxu0 0.0
        %1392 = vmatpush2.xpose.msra.mxu0 0.0
        %1393 = vmatprep.subr.mxu0 0.0
        %1394 = vmatpush2.xpose.msra.mxu0 0.0
        %1395 = vmatprep.subr.mxu0 0.0
        %1396 = vmatpush2.xpose.msra.mxu0 0.0
        %1397 = vmatprep.mubr.f32.mxu0 0.0
        %1398 = vmatmul.mubr.f32.gmra.mxu0 %v1329
        %v1399 = vpop.f32.mrf.mxu0
        %v1400 = vadd.f32 0.0, %v1399
        %v1401 = vpop.f32.mrf.mxu0
        %1402 = vdwg.mxu0
        %v1403 = vsel %vm832, %v1400, -inf
        %1404 = vmax.xlane.f32.xlu0 %v1403
        %v1405 = vpop.xlane.xlu0 %1404
        %v1406 = vsub.f32 %v1400, %v1405
        %v1407 = vmul.f32 %v1406, 1.442695
        %v1408 = vpow.pop %v1407
        %v1409 = vsel %vm832, %v1408, 0.0
        %1410 = vadd.xlane.f32.xlu0 %v1409
        %v1411 = vpop.xlane.xlu0 %1410
        %v1412 = vrcp.pop %v1411
        %v1413 = vmul.f32 %v1408, %v1412
        %1414 = vrot.lane.b32.xlu0 %v825, 40
        %v1415 = vpop.permute.xlu0 %1414
        %v1418 = vsel %vm832, %v1413, 0
        %1420 = vmatprep.subr.mxu0 0.0
        %1421 = vmatpush1.msra.mxu0 0.0
        %1422 = vmatprep.subr.mxu0 0.0
        %1423 = vmatpush1.msra.mxu0 0.0
        %1424 = vmatprep.subr.mxu0 0.0
        %1425 = vmatpush1.msra.mxu0 0.0
        %1426 = vmatprep.subr.mxu0 0.0
        %1427 = vmatpush1.msra.mxu0 0.0
        %1428 = vmatprep.subr.mxu0 0.0
        %1429 = vmatpush1.msra.mxu0 0.0
        %1430 = vmatprep.subr.mxu0 0.0
        %1431 = vmatpush1.msra.mxu0 0.0
        %1432 = vmatprep.subr.mxu0 0.0
        %1433 = vmatpush1.msra.mxu0 0.0
        %1434 = vmatprep.subr.mxu0 0.0
        %1435 = vmatpush1.msra.mxu0 0.0
        %1436 = vmatprep.subr.mxu0 0.0
        %1437 = vmatpush1.msra.mxu0 0.0
        %1438 = vmatprep.subr.mxu0 0.0
        %1439 = vmatpush1.msra.mxu0 0.0
        %1440 = vmatprep.subr.mxu0 0.0
        %1441 = vmatpush1.msra.mxu0 0.0
        %1442 = vmatprep.subr.mxu0 0.0
        %1443 = vmatpush1.msra.mxu0 0.0
        %1444 = vmatprep.subr.mxu0 0.0
        %1445 = vmatpush1.msra.mxu0 0.0
        %1446 = vmatprep.subr.mxu0 0.0
        %1447 = vmatpush1.msra.mxu0 0.0
        %1448 = vmatprep.subr.mxu0 0.0
        %1449 = vmatpush1.msra.mxu0 0.0
        %1450 = vmatprep.subr.mxu0 0.0
        %1451 = vmatpush1.msra.mxu0 %v1415
        %1452 = vmatprep.subr.mxu0 0.0
        %1453 = vmatpush2.msra.mxu0 0.0
        %1454 = vmatprep.subr.mxu0 0.0
        %1455 = vmatpush2.msra.mxu0 0.0
        %1456 = vmatprep.subr.mxu0 0.0
        %1457 = vmatpush2.msra.mxu0 0.0
        %1458 = vmatprep.subr.mxu0 0.0
        %1459 = vmatpush2.msra.mxu0 0.0
        %1460 = vmatprep.subr.mxu0 0.0
        %1461 = vmatpush2.msra.mxu0 0.0
        %1462 = vmatprep.subr.mxu0 0.0
        %1463 = vmatpush2.msra.mxu0 0.0
        %1464 = vmatprep.subr.mxu0 0.0
        %1465 = vmatpush2.msra.mxu0 0.0
        %1466 = vmatprep.subr.mxu0 0.0
        %1467 = vmatpush2.msra.mxu0 0.0
        %1468 = vmatprep.subr.mxu0 0.0
        %1469 = vmatpush2.msra.mxu0 0.0
        %1470 = vmatprep.subr.mxu0 0.0
        %1471 = vmatpush2.msra.mxu0 0.0
        %1472 = vmatprep.subr.mxu0 0.0
        %1473 = vmatpush2.msra.mxu0 0.0
        %1474 = vmatprep.subr.mxu0 0.0
        %1475 = vmatpush2.msra.mxu0 0.0
        %1476 = vmatprep.subr.mxu0 0.0
        %1477 = vmatpush2.msra.mxu0 0.0
        %1478 = vmatprep.subr.mxu0 0.0
        %1479 = vmatpush2.msra.mxu0 0.0
        %1480 = vmatprep.subr.mxu0 0.0
        %1481 = vmatpush2.msra.mxu0 0.0
        %1482 = vmatprep.subr.mxu0 0.0
        %1483 = vmatpush2.msra.mxu0 0.0
        %1484 = vmatprep.mubr.f32.mxu0 0.0
        %1485 = vmatmul.mubr.f32.gmra.mxu0 %v1418
        %v1486 = vpop.f32.mrf.mxu0
        %v1487 = vadd.f32 0.0, %v1486
        %v1488 = vpop.f32.mrf.mxu0
        %1489 = vdwg.mxu0
        %1491 = vrot.lane.b32.xlu0 %v1157, 8
        %v1492 = vpop.permute.xlu0 %1491
        %1495 = vrot.lane.b32.xlu0 %v1322, 16
        %v1496 = vpop.permute.xlu0 %1495
        %1499 = vrot.lane.b32.xlu0 %v1487, 24
        %v1500 = vpop.permute.xlu0 %1499
        %v1502 = vsel %vm832, %v992, %v1492
        %vm1503 = vcmask 130048
        %v1504 = vsel %vm1503, %v1502, %v1496
        %vm1505 = vcmask 195584
        %v1506 = vsel %vm1505, %v1504, %v1500
        %v1507 = vld [vmem:[%s718] sm:$0xff]
        %v1508 = vld [vmem:[%s718 + $0x8] sm:$0xff]
        %v1509 = vld [vmem:[%s718 + $0x10] sm:$0xff]
        %v1510 = vld [vmem:[%s718 + $0x18] sm:$0xff]
        %v1511 = vld [vmem:[%s589] sm:$0x1]
        %v1513 = vlaneseq
        %v1514 = vshrl.u32 %v1513, 7
        %v1515 = vsub.s32 0, %v1514
        %v1516 = vrot.slane %v1511, %v1515
        %v1519 = vsel %vm754, %v1506, 0
        %1521 = vmatprep.subr.mxu0 0.0
        %1522 = vmatpush1.msra.mxu0 0.0
        %1523 = vmatprep.subr.mxu0 0.0
        %1524 = vmatpush1.msra.mxu0 0.0
        %1525 = vmatprep.subr.mxu0 0.0
        %1526 = vmatpush1.msra.mxu0 0.0
        %1527 = vmatprep.subr.mxu0 0.0
        %1528 = vmatpush1.msra.mxu0 0.0
        %1529 = vmatprep.subr.mxu0 0.0
        %1530 = vmatpush1.msra.mxu0 0.0
        %1531 = vmatprep.subr.mxu0 0.0
        %1532 = vmatpush1.msra.mxu0 0.0
        %1533 = vmatprep.subr.mxu0 0.0
        %1534 = vmatpush1.msra.mxu0 0.0
        %1535 = vmatprep.subr.mxu0 0.0
        %1536 = vmatpush1.msra.mxu0 0.0
        %1537 = vmatprep.subr.mxu0 0.0
        %1538 = vmatpush1.msra.mxu0 0.0
        %1539 = vmatprep.subr.mxu0 0.0
        %1540 = vmatpush1.msra.mxu0 0.0
        %1541 = vmatprep.subr.mxu0 0.0
        %1542 = vmatpush1.msra.mxu0 0.0
        %1543 = vmatprep.subr.mxu0 0.0
        %1544 = vmatpush1.msra.mxu0 0.0
        %1545 = vmatprep.subr.mxu0 0.0
        %1546 = vmatpush1.msra.mxu0 %v1510
        %1547 = vmatprep.subr.mxu0 0.0
        %1548 = vmatpush1.msra.mxu0 %v1509
        %1549 = vmatprep.subr.mxu0 0.0
        %1550 = vmatpush1.msra.mxu0 %v1508
        %1551 = vmatprep.subr.mxu0 0.0
        %1552 = vmatpush1.msra.mxu0 %v1507
        %1553 = vmatprep.subr.mxu0 0.0
        %1554 = vmatpush2.msra.mxu0 0.0
        %1555 = vmatprep.subr.mxu0 0.0
        %1556 = vmatpush2.msra.mxu0 0.0
        %1557 = vmatprep.subr.mxu0 0.0
        %1558 = vmatpush2.msra.mxu0 0.0
        %1559 = vmatprep.subr.mxu0 0.0
        %1560 = vmatpush2.msra.mxu0 0.0
        %1561 = vmatprep.subr.mxu0 0.0
        %1562 = vmatpush2.msra.mxu0 0.0
        %1563 = vmatprep.subr.mxu0 0.0
        %1564 = vmatpush2.msra.mxu0 0.0
        %1565 = vmatprep.subr.mxu0 0.0
        %1566 = vmatpush2.msra.mxu0 0.0
        %1567 = vmatprep.subr.mxu0 0.0
        %1568 = vmatpush2.msra.mxu0 0.0
        %1569 = vmatprep.subr.mxu0 0.0
        %1570 = vmatpush2.msra.mxu0 0.0
        %1571 = vmatprep.subr.mxu0 0.0
        %1572 = vmatpush2.msra.mxu0 0.0
        %1573 = vmatprep.subr.mxu0 0.0
        %1574 = vmatpush2.msra.mxu0 0.0
        %1575 = vmatprep.subr.mxu0 0.0
        %1576 = vmatpush2.msra.mxu0 0.0
        %1577 = vmatprep.subr.mxu0 0.0
        %1578 = vmatpush2.msra.mxu0 0.0
        %1579 = vmatprep.subr.mxu0 0.0
        %1580 = vmatpush2.msra.mxu0 0.0
        %1581 = vmatprep.subr.mxu0 0.0
        %1582 = vmatpush2.msra.mxu0 0.0
        %1583 = vmatprep.subr.mxu0 0.0
        %1584 = vmatpush2.msra.mxu0 0.0
        %1585 = vmatprep.mubr.f32.mxu0 0.0
        %1586 = vmatmul.mubr.f32.gmra.mxu0 %v1519
        %v1587 = vpop.f32.mrf.mxu0
        %v1588 = vadd.f32 %v1516, %v1587
        %v1589 = vpop.f32.mrf.mxu0
        %1590 = vdwg.mxu0
        %v1591 = vadd.f32 %v742, %v1588
        %v1592 = vld [vmem:[%s721] sm:$0x1]
        %v1593 = vld [vmem:[%s597] sm:$0x1]
        %v1594 = vsel %vm754, %v1591, 0.0
        %1595 = vadd.xlane.f32.xlu0 %v1594
        %v1596 = vpop.xlane.xlu0 %1595
        %v1597 = vrcp.pop 32.0
        %v1598 = vmul.f32 %v1596, %v1597
        %v1599 = vsub.f32 %v1591, %v1598
        %v1600 = vmul.f32 %v1599, %v1599
        %v1601 = vsel %vm754, %v1600, 0.0
        %1602 = vadd.xlane.f32.xlu0 %v1601
        %v1603 = vpop.xlane.xlu0 %1602
        %v1604 = vmul.f32 %v1603, %v1597
        %v1605 = vadd.f32 %v1604, 1e-12
        %v1606 = vrsqrt.pop %v1605
        %v1607 = vmul.f32 %v1599, %v1606
        %v1609 = vlaneseq
        %v1610 = vshrl.u32 %v1609, 7
        %v1611 = vsub.s32 0, %v1610
        %v1612 = vrot.slane %v1592, %v1611
        %v1614 = vmul.f32 %v1607, %v1612
        %v1616 = vlaneseq
        %v1617 = vshrl.u32 %v1616, 7
        %v1618 = vsub.s32 0, %v1617
        %v1619 = vrot.slane %v1593, %v1618
        %v1621 = vadd.f32 %v1614, %v1619
        %v1622 = vld [vmem:[%s726] sm:$0xff]
        %v1623 = vld [vmem:[%s726 + $0x8] sm:$0xff]
        %v1624 = vld [vmem:[%s726 + $0x10] sm:$0xff]
        %v1625 = vld [vmem:[%s726 + $0x18] sm:$0xff]
        %v1626 = vld [vmem:[%s605] sm:$0x1]
        %v1628 = vlaneseq
        %v1629 = vshrl.u32 %v1628, 7
        %v1630 = vsub.s32 0, %v1629
        %v1631 = vrot.slane %v1626, %v1630
        %v1634 = vsel %vm754, %v1621, 0
        %1636 = vmatprep.subr.mxu0 0.0
        %1637 = vmatpush1.msra.mxu0 0.0
        %1638 = vmatprep.subr.mxu0 0.0
        %1639 = vmatpush1.msra.mxu0 0.0
        %1640 = vmatprep.subr.mxu0 0.0
        %1641 = vmatpush1.msra.mxu0 0.0
        %1642 = vmatprep.subr.mxu0 0.0
        %1643 = vmatpush1.msra.mxu0 0.0
        %1644 = vmatprep.subr.mxu0 0.0
        %1645 = vmatpush1.msra.mxu0 0.0
        %1646 = vmatprep.subr.mxu0 0.0
        %1647 = vmatpush1.msra.mxu0 0.0
        %1648 = vmatprep.subr.mxu0 0.0
        %1649 = vmatpush1.msra.mxu0 0.0
        %1650 = vmatprep.subr.mxu0 0.0
        %1651 = vmatpush1.msra.mxu0 0.0
        %1652 = vmatprep.subr.mxu0 0.0
        %1653 = vmatpush1.msra.mxu0 0.0
        %1654 = vmatprep.subr.mxu0 0.0
        %1655 = vmatpush1.msra.mxu0 0.0
        %1656 = vmatprep.subr.mxu0 0.0
        %1657 = vmatpush1.msra.mxu0 0.0
        %1658 = vmatprep.subr.mxu0 0.0
        %1659 = vmatpush1.msra.mxu0 0.0
        %1660 = vmatprep.subr.mxu0 0.0
        %1661 = vmatpush1.msra.mxu0 %v1625
        %1662 = vmatprep.subr.mxu0 0.0
        %1663 = vmatpush1.msra.mxu0 %v1624
        %1664 = vmatprep.subr.mxu0 0.0
        %1665 = vmatpush1.msra.mxu0 %v1623
        %1666 = vmatprep.subr.mxu0 0.0
        %1667 = vmatpush1.msra.mxu0 %v1622
        %1668 = vmatprep.subr.mxu0 0.0
        %1669 = vmatpush2.msra.mxu0 0.0
        %1670 = vmatprep.subr.mxu0 0.0
        %1671 = vmatpush2.msra.mxu0 0.0
        %1672 = vmatprep.subr.mxu0 0.0
        %1673 = vmatpush2.msra.mxu0 0.0
        %1674 = vmatprep.subr.mxu0 0.0
        %1675 = vmatpush2.msra.mxu0 0.0
        %1676 = vmatprep.subr.mxu0 0.0
        %1677 = vmatpush2.msra.mxu0 0.0
        %1678 = vmatprep.subr.mxu0 0.0
        %1679 = vmatpush2.msra.mxu0 0.0
        %1680 = vmatprep.subr.mxu0 0.0
        %1681 = vmatpush2.msra.mxu0 0.0
        %1682 = vmatprep.subr.mxu0 0.0
        %1683 = vmatpush2.msra.mxu0 0.0
        %1684 = vmatprep.subr.mxu0 0.0
        %1685 = vmatpush2.msra.mxu0 0.0
        %1686 = vmatprep.subr.mxu0 0.0
        %1687 = vmatpush2.msra.mxu0 0.0
        %1688 = vmatprep.subr.mxu0 0.0
        %1689 = vmatpush2.msra.mxu0 0.0
        %1690 = vmatprep.subr.mxu0 0.0
        %1691 = vmatpush2.msra.mxu0 0.0
        %1692 = vmatprep.subr.mxu0 0.0
        %1693 = vmatpush2.msra.mxu0 0.0
        %1694 = vmatprep.subr.mxu0 0.0
        %1695 = vmatpush2.msra.mxu0 0.0
        %1696 = vmatprep.subr.mxu0 0.0
        %1697 = vmatpush2.msra.mxu0 0.0
        %1698 = vmatprep.subr.mxu0 0.0
        %1699 = vmatpush2.msra.mxu0 0.0
        %1700 = vmatprep.mubr.f32.mxu0 0.0
        %1701 = vmatmul.mubr.f32.gmra.mxu0 %v1634
        %v1702 = vpop.f32.mrf.mxu0
        %v1703 = vadd.f32 %v1631, %v1702
        %v1704 = vpop.f32.mrf.mxu0
        %1705 = vdwg.mxu0
        %v1706 = vmul.f32 %v1703, 0.5
        %v1707 = vmul.f32 %v1703, 0.044715
        %v1708 = vmul.f32 %v1707, %v1703
        %v1709 = vmul.f32 %v1708, %v1703
        %v1710 = vadd.f32 %v1703, %v1709
        %v1711 = vmul.f32 %v1710, 0.7978846
        %v1712 = vtanh.pop %v1711
        %v1713 = vadd.f32 %v1712, 1.0
        %v1714 = vmul.f32 %v1706, %v1713
        %v1715 = vld [vmem:[%s731] sm:$0xff]
        %v1716 = vld [vmem:[%s731 + $0x8] sm:$0xff]
        %v1717 = vld [vmem:[%s731 + $0x10] sm:$0xff]
        %v1718 = vld [vmem:[%s731 + $0x18] sm:$0xff]
        %v1719 = vld [vmem:[%s731 + $0x20] sm:$0xff]
        %v1720 = vld [vmem:[%s731 + $0x28] sm:$0xff]
        %v1721 = vld [vmem:[%s731 + $0x30] sm:$0xff]
        %v1722 = vld [vmem:[%s731 + $0x38] sm:$0xff]
        %v1723 = vld [vmem:[%s734] sm:$0x1]
        %v1725 = vlaneseq
        %v1726 = vshrl.u32 %v1725, 7
        %v1727 = vsub.s32 0, %v1726
        %v1728 = vrot.slane %v1723, %v1727
        %vm1730 = vcmask 523264
        %v1732 = vsel %vm1730, %v1714, 0
        %1734 = vmatprep.subr.mxu0 0.0
        %1735 = vmatpush1.msra.mxu0 0.0
        %1736 = vmatprep.subr.mxu0 0.0
        %1737 = vmatpush1.msra.mxu0 0.0
        %1738 = vmatprep.subr.mxu0 0.0
        %1739 = vmatpush1.msra.mxu0 0.0
        %1740 = vmatprep.subr.mxu0 0.0
        %1741 = vmatpush1.msra.mxu0 0.0
        %1742 = vmatprep.subr.mxu0 0.0
        %1743 = vmatpush1.msra.mxu0 0.0
        %1744 = vmatprep.subr.mxu0 0.0
        %1745 = vmatpush1.msra.mxu0 0.0
        %1746 = vmatprep.subr.mxu0 0.0
        %1747 = vmatpush1.msra.mxu0 0.0
        %1748 = vmatprep.subr.mxu0 0.0
        %1749 = vmatpush1.msra.mxu0 0.0
        %1750 = vmatprep.subr.mxu0 0.0
        %1751 = vmatpush1.msra.mxu0 %v1722
        %1752 = vmatprep.subr.mxu0 0.0
        %1753 = vmatpush1.msra.mxu0 %v1721
        %1754 = vmatprep.subr.mxu0 0.0
        %1755 = vmatpush1.msra.mxu0 %v1720
        %1756 = vmatprep.subr.mxu0 0.0
        %1757 = vmatpush1.msra.mxu0 %v1719
        %1758 = vmatprep.subr.mxu0 0.0
        %1759 = vmatpush1.msra.mxu0 %v1718
        %1760 = vmatprep.subr.mxu0 0.0
        %1761 = vmatpush1.msra.mxu0 %v1717
        %1762 = vmatprep.subr.mxu0 0.0
        %1763 = vmatpush1.msra.mxu0 %v1716
        %1764 = vmatprep.subr.mxu0 0.0
        %1765 = vmatpush1.msra.mxu0 %v1715
        %1766 = vmatprep.subr.mxu0 0.0
        %1767 = vmatpush2.msra.mxu0 0.0
        %1768 = vmatprep.subr.mxu0 0.0
        %1769 = vmatpush2.msra.mxu0 0.0
        %1770 = vmatprep.subr.mxu0 0.0
        %1771 = vmatpush2.msra.mxu0 0.0
        %1772 = vmatprep.subr.mxu0 0.0
        %1773 = vmatpush2.msra.mxu0 0.0
        %1774 = vmatprep.subr.mxu0 0.0
        %1775 = vmatpush2.msra.mxu0 0.0
        %1776 = vmatprep.subr.mxu0 0.0
        %1777 = vmatpush2.msra.mxu0 0.0
        %1778 = vmatprep.subr.mxu0 0.0
        %1779 = vmatpush2.msra.mxu0 0.0
        %1780 = vmatprep.subr.mxu0 0.0
        %1781 = vmatpush2.msra.mxu0 0.0
        %1782 = vmatprep.subr.mxu0 0.0
        %1783 = vmatpush2.msra.mxu0 0.0
        %1784 = vmatprep.subr.mxu0 0.0
        %1785 = vmatpush2.msra.mxu0 0.0
        %1786 = vmatprep.subr.mxu0 0.0
        %1787 = vmatpush2.msra.mxu0 0.0
        %1788 = vmatprep.subr.mxu0 0.0
        %1789 = vmatpush2.msra.mxu0 0.0
        %1790 = vmatprep.subr.mxu0 0.0
        %1791 = vmatpush2.msra.mxu0 0.0
        %1792 = vmatprep.subr.mxu0 0.0
        %1793 = vmatpush2.msra.mxu0 0.0
        %1794 = vmatprep.subr.mxu0 0.0
        %1795 = vmatpush2.msra.mxu0 0.0
        %1796 = vmatprep.subr.mxu0 0.0
        %1797 = vmatpush2.msra.mxu0 0.0
        %1798 = vmatprep.mubr.f32.mxu0 0.0
        %1799 = vmatmul.mubr.f32.gmra.mxu0 %v1732
        %v1800 = vpop.f32.mrf.mxu0
        %v1801 = vadd.f32 %v1728, %v1800
        %v1802 = vpop.f32.mrf.mxu0
        %1803 = vdwg.mxu0
        %v1804 = vadd.f32 %v1621, %v1801
        %v1805 = vld [vmem:[%s613] sm:$0x1]
        %v1806 = vld [vmem:[%s621] sm:$0x1]
        %v1807 = vsel %vm754, %v1804, 0.0
        %1808 = vadd.xlane.f32.xlu0 %v1807
        %v1809 = vpop.xlane.xlu0 %1808
        %v1810 = vmul.f32 %v1809, %v1597
        %v1811 = vsub.f32 %v1804, %v1810
        %v1812 = vmul.f32 %v1811, %v1811
        %v1813 = vsel %vm754, %v1812, 0.0
        %1814 = vadd.xlane.f32.xlu0 %v1813
        %v1815 = vpop.xlane.xlu0 %1814
        %v1816 = vmul.f32 %v1815, %v1597
        %v1817 = vadd.f32 %v1816, 1e-12
        %v1818 = vrsqrt.pop %v1817
        %v1819 = vmul.f32 %v1811, %v1818
        %v1821 = vlaneseq
        %v1822 = vshrl.u32 %v1821, 7
        %v1823 = vsub.s32 0, %v1822
        %v1824 = vrot.slane %v1805, %v1823
        %v1826 = vmul.f32 %v1819, %v1824
        %v1828 = vlaneseq
        %v1829 = vshrl.u32 %v1828, 7
        %v1830 = vsub.s32 0, %v1829
        %v1831 = vrot.slane %v1806, %v1830
        %v1833 = vadd.f32 %v1826, %v1831
        %1834 = vst.msk [vmem:[#allocation2] sm:$0xff] %vm754, %v1833
        %1835 = vst.msk [vmem:[%s708] sm:$0xff] %vm754, %v1833
        %s1836 = sand.u32 %s378, 1
        %s1837 = scalar_lea.sflag [#allocation5], %s1836
        %s1838 = sand.u32 %s378, 1
        %s1839 = smul.addr %s1838, 8
        %s1840 = scalar_lea.vmem [#allocation15], %s1839
        // Predicated region
        $region105: #{bert_layers.1} parent=71 // pred_check
          %p1841 = pneg %p388
        $region106: #{bert_layers.1} parent=71 // pred_check_branch
          %1843 = sbr.rel (%p1841) target = $region108
        $region107: #{bert_layers.1} parent=71 // pred_region
          %s1845 = ssub.s32 128, 128
          %1846 = vsyncadd %s1837, %s1845
          %s1847 = smul.addr %s37, 128
          %s1848 = scalar_lea.hbm %s13, %s1847
          %s1850 = sshll.u32 %s1840, 4
          %s1851 = int_to_ptr.vmem [resolvable:$true] %s1850
          %1853 = dma.vmem_to_hbm [thread:$0]  %s1851, 128, %s1848, %s1837
        $region108: #{bert_layers.1} parent=71 // pred_fallthru
          _
      $region72: #{bert_layers.1} parent=5 // pred_fallthru
        _
      %p1854 = scmp.le.s32.totalorder 2, %s32
      // Predicated region
      $region109: #{bert_layers.1} parent=5 // pred_check
        %p1855 = pneg %p1854
      $region110: #{bert_layers.1} parent=5 // pred_check_branch
        %1857 = sbr.rel (%p1855) target = $region112
      $region111: #{bert_layers.1} parent=5 // pred_region
        %s1858 = ssub.s32 %s32, 2
        // Predicated region
        $region113: #{bert_layers.1} parent=111 // pred_check
          %p1859 = pneg %p394
        $region114: #{bert_layers.1} parent=111 // pred_check_branch
          %1861 = sbr.rel (%p1859) target = $region116
        $region115: #{bert_layers.1} parent=111 // pred_region
          %s1862 = sand.u32 %s379, 1
          %s1863 = scalar_lea.sflag [#allocation5], %s1862
          %s1864 = sand.u32 %s379, 1
          %s1865 = smul.addr %s1864, 8
          %s1866 = scalar_lea.vmem [#allocation15], %s1865
          %1867 = dma.done %s1863, 128
        $region116: #{bert_layers.1} parent=111 // pred_fallthru
          _
      $region112: #{bert_layers.1} parent=5 // pred_fallthru
        _
    $region6: #{bert_layers.1} parent=1 // loop_footer
      %s36 = sadd.s32 1, %s32
    $region7: #{bert_layers.1} parent=1 // loop_footer_branch
      %31 = sbr.rel target = $region3
    $region8: #{bert_layers.1} parent=1 // loop_exit
      _
    %1868 = vsyncpa [#allocation4], 1
    %s1869 = scalar_lea.sflag [#allocation4], 1
    %1870 = vsyncpa %s1869, 1
    %1871 = vsyncpa [#allocation7], 1
    %s1872 = scalar_lea.sflag [#allocation7], 1
    %1873 = vsyncpa %s1872, 1
    %1874 = vsyncpa [#allocation10], 1
    %s1875 = scalar_lea.sflag [#allocation10], 1
    %1876 = vsyncpa %s1875, 1
    %1877 = vsyncpa [#allocation13], 1
    %s1878 = scalar_lea.sflag [#allocation13], 1
    %1879 = vsyncpa %s1878, 1
    %1880 = vsyncpa [#allocation5], 1
    %s1881 = scalar_lea.sflag [#allocation5], 1
    %1882 = vsyncpa %s1881, 1

</llo_original>
